<compile_context>
chip_gen: v5e
topology: v5e:2x2
jax: 0.10.0
libtpu: 0.0.40
codegen_flags: <defaults>
</compile_context>

<pallas_src>
import functools

import jax
import jax.numpy as jnp
from jax.experimental import pallas as pl
from jax.experimental.pallas import tpu as pltpu

CPAD = 128    # lane-dense channel padding for every conv output
TM_MAX = 256  # max row tile of the fused im2col GEMM


def _round_up(x, m):
    return (x + m - 1) // m * m


# ----------------------------------------------------------------------------
# Pallas kernel: im2col GEMM + folded-BN bias + optional fused 1x1-downsample
# GEMM + optional residual add + optional ReLU, all in a single epilogue.
# ----------------------------------------------------------------------------
def _fused_conv_kernel(*refs, relu, has_res, has_down):
    it = iter(refs)
    p_ref = next(it)
    w_ref = next(it)
    b_ref = next(it)
    if has_down:
        pd_ref = next(it)
        wd_ref = next(it)
        bd_ref = next(it)
    if has_res:
        res_ref = next(it)
    o_ref = next(it)

    # bf16 operands, f32 accumulation on the MXU; epilogue strictly in f32.
    y = jnp.dot(p_ref[...], w_ref[...], preferred_element_type=jnp.float32)
    y = y + b_ref[...]
    if has_down:
        y = y + jnp.dot(pd_ref[...], wd_ref[...],
                        preferred_element_type=jnp.float32) + bd_ref[...]
    if has_res:
        y = y + res_ref[...]
    if relu:
        y = jnp.maximum(y, 0.0)
    o_ref[...] = y.astype(o_ref.dtype)


def fused_conv_gemm(patches, w, bias, *, relu, residual=None, down=None):
    """patches: [M, K] bf16, w: [K, 128] bf16, bias: [1, 128] f32.

    Optional residual [M, 128] f32 and/or fused 1x1-downsample GEMM
    (pd [M, Kd] bf16, wd [Kd, 128] bf16, bd [1, 128] f32). Returns [M, 128] f32.
    """
    M = patches.shape[0]
    N = w.shape[1]
    K = w.shape[0]

    TM = min(TM_MAX, _round_up(M, 128))
    Mp = _round_up(M, TM)

    def pad_rows(a):
        return a if a.shape[0] == Mp else jnp.pad(a, ((0, Mp - a.shape[0]), (0, 0)))

    def pad_cols(a, k):
        return a if a.shape[1] == k else jnp.pad(a, ((0, 0), (0, k - a.shape[1])))

    patches = pad_rows(pad_cols(patches, K))

    inputs = [patches, w, bias]
    in_specs = [
        pl.BlockSpec((TM, K), lambda i: (i, 0)),
        pl.BlockSpec((K, N), lambda i: (0, 0)),
        pl.BlockSpec((1, N), lambda i: (0, 0)),
    ]
    if down is not None:
        pd, wd, bd = down
        Kd = wd.shape[0]
        pd = pad_rows(pad_cols(pd, Kd))
        inputs += [pd, wd, bd]
        in_specs += [
            pl.BlockSpec((TM, Kd), lambda i: (i, 0)),
            pl.BlockSpec((Kd, N), lambda i: (0, 0)),
            pl.BlockSpec((1, N), lambda i: (0, 0)),
        ]
    if residual is not None:
        inputs.append(pad_rows(residual))
        in_specs.append(pl.BlockSpec((TM, N), lambda i: (i, 0)))

    kernel = functools.partial(_fused_conv_kernel, relu=relu,
                               has_res=residual is not None,
                               has_down=down is not None)
    out = pl.pallas_call(
        kernel,
        out_shape=jax.ShapeDtypeStruct((Mp, N), jnp.float32),
        grid_spec=pltpu.PrefetchScalarGridSpec(
            num_scalar_prefetch=0,
            grid=(Mp // TM,),
            in_specs=in_specs,
            out_specs=pl.BlockSpec((TM, N), lambda i: (i, 0)),
        ),
        compiler_params=pltpu.CompilerParams(
            dimension_semantics=("parallel",)),
    )(*inputs)
    return out if Mp == M else out[:M]


# ----------------------------------------------------------------------------
# JAX glue: im2col, parameter setup, backbone wiring
# ----------------------------------------------------------------------------
def im2col(x_nhwc, kh, kw, stride, pad):
    """Extract conv patches. Returns ([N*Ho*Wo, kh*kw*C], (N, Ho, Wo))."""
    n, h, w, c = x_nhwc.shape
    xp = jnp.pad(x_nhwc, ((0, 0), (pad, pad), (pad, pad), (0, 0)))
    ho = (h + 2 * pad - kh) // stride + 1
    wo = (w + 2 * pad - kw) // stride + 1
    cols = []
    for i in range(kh):
        for j in range(kw):
            cols.append(xp[:, i:i + ho * stride:stride,
                           j:j + wo * stride:stride, :])
    patches = jnp.concatenate(cols, axis=-1)  # [N, Ho, Wo, kh*kw*C]
    return patches.reshape(n * ho * wo, kh * kw * c), (n, ho, wo)


def init_conv_bn(key, cin, cout, kh, kw):
    """Conv weight with BN scale folded in; K padded to x16, Cout to 128."""
    k_w, k_g, k_b, k_m, k_v = jax.random.split(key, 5)
    fan_in = cin * kh * kw
    # PyTorch conv weight layout [Cout, Cin, kh, kw] -> GEMM [kh*kw*Cin, Cout]
    w = jax.random.normal(k_w, (cout, cin, kh, kw), jnp.float32) / jnp.sqrt(
        jnp.float32(fan_in))
    gamma = 1.0 + 0.1 * jax.random.normal(k_g, (cout,), jnp.float32)
    beta = 0.05 * jax.random.normal(k_b, (cout,), jnp.float32)
    mean = 0.1 * jax.random.normal(k_m, (cout,), jnp.float32)
    var = 0.5 + 0.5 * jax.random.uniform(k_v, (cout,), jnp.float32)
    eps = 1e-5
    scale = gamma / jnp.sqrt(var + eps)
    bias = beta - mean * scale
    w_gemm = jnp.transpose(w, (2, 3, 1, 0)).reshape(kh * kw * cin, cout)
    w_gemm = w_gemm * scale[None, :]          # fold BN scale into weights
    kp = _round_up(kh * kw * cin, 16)         # bf16-friendly K
    w_gemm = jnp.pad(w_gemm, ((0, kp - kh * kw * cin), (0, CPAD - cout)))
    bias = jnp.pad(bias, (0, CPAD - cout)).reshape(1, CPAD)
    return w_gemm.astype(jnp.bfloat16), bias.astype(jnp.float32)


def conv_bn(x_nhwc, params, *, cin, kh, kw, stride, pad, relu,
            residual=None, down=None):
    """Conv (+ folded BN) on a (possibly channel-padded) NHWC activation."""
    w, b = params
    xs = x_nhwc[..., :cin].astype(jnp.bfloat16)   # drop lane-padding channels
    patches, (n, ho, wo) = im2col(xs, kh, kw, stride, pad)
    y = fused_conv_gemm(patches, w, b, relu=relu, residual=residual, down=down)
    return y.reshape(n, ho, wo, CPAD)


def init_encoder_params(key):
    keys = jax.random.split(key, 6)
    return {
        # stem: 3 -> 16, 3x3 stride 2
        "stem": init_conv_bn(keys[0], 3, 16, 3, 3),
        # block1: 16 -> 16, stride 1 (identity residual)
        "b1_conv1": init_conv_bn(keys[1], 16, 16, 3, 3),
        "b1_conv2": init_conv_bn(keys[2], 16, 16, 3, 3),
        # block2: 16 -> 32, stride 2 (1x1 downsample on residual)
        "b2_conv1": init_conv_bn(keys[3], 16, 32, 3, 3),
        "b2_conv2": init_conv_bn(keys[4], 32, 32, 3, 3),
        "b2_down": init_conv_bn(keys[5], 16, 32, 1, 1),
    }


def encoder_forward(params, images_nchw):
    """Equivalent of Encoder.forward: backbone(images).permute(0, 2, 3, 1)."""
    # NCHW -> NHWC once; all later layouts are NHWC, so the final
    # permute(0, 2, 3, 1) of the PyTorch forward is already baked in.
    x = jnp.transpose(images_nchw, (0, 2, 3, 1)).astype(jnp.float32)

    # stem: conv3x3 s2 + BN + ReLU
    x = conv_bn(x, params["stem"], cin=3, kh=3, kw=3, stride=2, pad=1,
                relu=True)

    # block1: conv-bn-relu, conv-bn, identity residual + ReLU (fused epilogue)
    n, h, w, _ = x.shape
    res1 = x.reshape(n * h * w, CPAD)
    y = conv_bn(x, params["b1_conv1"], cin=16, kh=3, kw=3, stride=1, pad=1,
                relu=True)
    x1 = conv_bn(y, params["b1_conv2"], cin=16, kh=3, kw=3, stride=1, pad=1,
                 relu=True, residual=res1)

    # block2: conv-bn-relu (s2), then conv-bn + 1x1-downsample-bn + add + ReLU
    # all fused into a single pallas_call.
    y = conv_bn(x1, params["b2_conv1"], cin=16, kh=3, kw=3, stride=2, pad=1,
                relu=True)
    pd, _ = im2col(x1[..., :16].astype(jnp.bfloat16), 1, 1, 2, 0)
    wd, bd = params["b2_down"]
    x2 = conv_bn(y, params["b2_conv2"], cin=32, kh=3, kw=3, stride=1, pad=1,
                 relu=True, down=(pd, wd, bd))

    # drop lane-padding channels; output is NHWC (== permute(0, 2, 3, 1))
    return x2[..., :32]


if __name__ == "__main__":
    key = jax.random.PRNGKey(0)
    k_params, k_img = jax.random.split(key)
    params = init_encoder_params(k_params)
    images = jax.random.normal(k_img, (2, 3, 32, 32), jnp.float32)  # NCHW

    feature_map = jax.jit(encoder_forward)(params, images)
    feature_map = jax.block_until_ready(feature_map)
    assert feature_map.shape == (2, 8, 8, 32), feature_map.shape
    print("KERNEL_OK")
</pallas_src>

<mosaic_0001>
module attributes {stable_mosaic.version = 11 : i64} {
  func.func @_fused_conv_kernel(%arg0: i32, %arg1: memref<256x32xbf16, #tpu.memory_space<vmem>>, %arg2: memref<32x128xbf16, #tpu.memory_space<vmem>>, %arg3: memref<1x128xf32, #tpu.memory_space<vmem>>, %arg4: memref<256x128xf32, #tpu.memory_space<vmem>>) attributes {dimension_semantics = [#tpu.dimension_semantics<parallel>], iteration_bounds = array<i64: 2>, scalar_prefetch = 0 : i64, scratch_operands = 0 : i64, tpu.core_type = #tpu.core_type<tc>, window_params = [{transform_indices = @transform_0, window_bounds = array<i64: 256, 32>}, {pipeline_mode = #tpu.pipeline_mode<synchronous>, transform_indices = @transform_1, window_bounds = array<i64: 32, 128>}, {pipeline_mode = #tpu.pipeline_mode<synchronous>, transform_indices = @transform_2, window_bounds = array<i64: 1, 128>}, {transform_indices = @transform_3, window_bounds = array<i64: 256, 128>}]} {
    %c0 = arith.constant 0 : index
    %c0_0 = arith.constant 0 : index
    %0 = vector.load %arg1[%c0, %c0_0] : memref<256x32xbf16, #tpu.memory_space<vmem>>, vector<256x32xbf16>
    %c0_1 = arith.constant 0 : index
    %c0_2 = arith.constant 0 : index
    %1 = vector.load %arg2[%c0_1, %c0_2] : memref<32x128xbf16, #tpu.memory_space<vmem>>, vector<32x128xbf16>
    %cst = arith.constant dense<0.000000e+00> : vector<256x128xf32>
    %2 = tpu.matmul %0, %1, %cst {dimension_numbers = #tpu.dot_dimension_numbers<[1], [0], [0], [1], [0, 0, 1, 1], [], []>} : vector<256x32xbf16>, vector<32x128xbf16>, vector<256x128xf32> -> vector<256x128xf32>
    %c0_3 = arith.constant 0 : index
    %c0_4 = arith.constant 0 : index
    %3 = vector.load %arg3[%c0_3, %c0_4] : memref<1x128xf32, #tpu.memory_space<vmem>>, vector<1x128xf32>
    %4 = vector.broadcast %3 : vector<1x128xf32> to vector<256x128xf32>
    %5 = arith.addf %2, %4 : vector<256x128xf32>
    %cst_5 = arith.constant 0.000000e+00 : f32
    %6 = vector.broadcast %cst_5 : f32 to vector<256x128xf32>
    %7 = arith.maximumf %5, %6 : vector<256x128xf32>
    %c0_6 = arith.constant 0 : index
    %c0_7 = arith.constant 0 : index
    %8 = vector.load %arg4[%c0_6, %c0_7] : memref<256x128xf32, #tpu.memory_space<vmem>>, vector<256x128xf32>
    tpu.vector_store %arg4[%c0_6, %c0_7], %7 {strides = array<i32>} : memref<256x128xf32, #tpu.memory_space<vmem>>, vector<256x128xf32>,
    return
  }
  func.func @transform_0(%arg0: i32) -> (i32, i32) {
    %c0_i32 = arith.constant 0 : i32
    %c0_i32_0 = arith.constant 0 : i32
    return %arg0, %c0_i32 : i32, i32
  }
  func.func @transform_1(%arg0: i32) -> (i32, i32) {
    %c0_i32 = arith.constant 0 : i32
    %c0_i32_0 = arith.constant 0 : i32
    %c0_i32_1 = arith.constant 0 : i32
    return %c0_i32, %c0_i32_0 : i32, i32
  }
  func.func @transform_2(%arg0: i32) -> (i32, i32) {
    %c0_i32 = arith.constant 0 : i32
    %c0_i32_0 = arith.constant 0 : i32
    %c0_i32_1 = arith.constant 0 : i32
    return %c0_i32, %c0_i32_0 : i32, i32
  }
  func.func @transform_3(%arg0: i32) -> (i32, i32) {
    %c0_i32 = arith.constant 0 : i32
    %c0_i32_0 = arith.constant 0 : i32
    return %arg0, %c0_i32 : i32, i32
  }
}

module attributes {stable_mosaic.version = 11 : i64} {
  func.func @_fused_conv_kernel(%arg0: i32, %arg1: memref<256x144xbf16, #tpu.memory_space<vmem>>, %arg2: memref<144x128xbf16, #tpu.memory_space<vmem>>, %arg3: memref<1x128xf32, #tpu.memory_space<vmem>>, %arg4: memref<256x128xf32, #tpu.memory_space<vmem>>) attributes {dimension_semantics = [#tpu.dimension_semantics<parallel>], iteration_bounds = array<i64: 2>, scalar_prefetch = 0 : i64, scratch_operands = 0 : i64, tpu.core_type = #tpu.core_type<tc>, window_params = [{transform_indices = @transform_0, window_bounds = array<i64: 256, 144>}, {pipeline_mode = #tpu.pipeline_mode<synchronous>, transform_indices = @transform_1, window_bounds = array<i64: 144, 128>}, {pipeline_mode = #tpu.pipeline_mode<synchronous>, transform_indices = @transform_2, window_bounds = array<i64: 1, 128>}, {transform_indices = @transform_3, window_bounds = array<i64: 256, 128>}]} {
    %c0 = arith.constant 0 : index
    %c0_0 = arith.constant 0 : index
    %0 = vector.load %arg1[%c0, %c0_0] : memref<256x144xbf16, #tpu.memory_space<vmem>>, vector<256x144xbf16>
    %c0_1 = arith.constant 0 : index
    %c0_2 = arith.constant 0 : index
    %1 = vector.load %arg2[%c0_1, %c0_2] : memref<144x128xbf16, #tpu.memory_space<vmem>>, vector<144x128xbf16>
    %cst = arith.constant dense<0.000000e+00> : vector<256x128xf32>
    %2 = tpu.matmul %0, %1, %cst {dimension_numbers = #tpu.dot_dimension_numbers<[1], [0], [0], [1], [0, 0, 1, 1], [], []>} : vector<256x144xbf16>, vector<144x128xbf16>, vector<256x128xf32> -> vector<256x128xf32>
    %c0_3 = arith.constant 0 : index
    %c0_4 = arith.constant 0 : index
    %3 = vector.load %arg3[%c0_3, %c0_4] : memref<1x128xf32, #tpu.memory_space<vmem>>, vector<1x128xf32>
    %4 = vector.broadcast %3 : vector<1x128xf32> to vector<256x128xf32>
    %5 = arith.addf %2, %4 : vector<256x128xf32>
    %cst_5 = arith.constant 0.000000e+00 : f32
    %6 = vector.broadcast %cst_5 : f32 to vector<256x128xf32>
    %7 = arith.maximumf %5, %6 : vector<256x128xf32>
    %c0_6 = arith.constant 0 : index
    %c0_7 = arith.constant 0 : index
    %8 = vector.load %arg4[%c0_6, %c0_7] : memref<256x128xf32, #tpu.memory_space<vmem>>, vector<256x128xf32>
    tpu.vector_store %arg4[%c0_6, %c0_7], %7 {strides = array<i32>} : memref<256x128xf32, #tpu.memory_space<vmem>>, vector<256x128xf32>,
    return
  }
  func.func @transform_0(%arg0: i32) -> (i32, i32) {
    %c0_i32 = arith.constant 0 : i32
    %c0_i32_0 = arith.constant 0 : i32
    return %arg0, %c0_i32 : i32, i32
  }
  func.func @transform_1(%arg0: i32) -> (i32, i32) {
    %c0_i32 = arith.constant 0 : i32
    %c0_i32_0 = arith.constant 0 : i32
    %c0_i32_1 = arith.constant 0 : i32
    return %c0_i32, %c0_i32_0 : i32, i32
  }
  func.func @transform_2(%arg0: i32) -> (i32, i32) {
    %c0_i32 = arith.constant 0 : i32
    %c0_i32_0 = arith.constant 0 : i32
    %c0_i32_1 = arith.constant 0 : i32
    return %c0_i32, %c0_i32_0 : i32, i32
  }
  func.func @transform_3(%arg0: i32) -> (i32, i32) {
    %c0_i32 = arith.constant 0 : i32
    %c0_i32_0 = arith.constant 0 : i32
    return %arg0, %c0_i32 : i32, i32
  }
}

module attributes {stable_mosaic.version = 11 : i64} {
  func.func @_fused_conv_kernel(%arg0: i32, %arg1: memref<256x144xbf16, #tpu.memory_space<vmem>>, %arg2: memref<144x128xbf16, #tpu.memory_space<vmem>>, %arg3: memref<1x128xf32, #tpu.memory_space<vmem>>, %arg4: memref<256x128xf32, #tpu.memory_space<vmem>>, %arg5: memref<256x128xf32, #tpu.memory_space<vmem>>) attributes {dimension_semantics = [#tpu.dimension_semantics<parallel>], iteration_bounds = array<i64: 2>, scalar_prefetch = 0 : i64, scratch_operands = 0 : i64, tpu.core_type = #tpu.core_type<tc>, window_params = [{transform_indices = @transform_0, window_bounds = array<i64: 256, 144>}, {pipeline_mode = #tpu.pipeline_mode<synchronous>, transform_indices = @transform_1, window_bounds = array<i64: 144, 128>}, {pipeline_mode = #tpu.pipeline_mode<synchronous>, transform_indices = @transform_2, window_bounds = array<i64: 1, 128>}, {transform_indices = @transform_3, window_bounds = array<i64: 256, 128>}, {transform_indices = @transform_4, window_bounds = array<i64: 256, 128>}]} {
    %c0 = arith.constant 0 : index
    %c0_0 = arith.constant 0 : index
    %0 = vector.load %arg1[%c0, %c0_0] : memref<256x144xbf16, #tpu.memory_space<vmem>>, vector<256x144xbf16>
    %c0_1 = arith.constant 0 : index
    %c0_2 = arith.constant 0 : index
    %1 = vector.load %arg2[%c0_1, %c0_2] : memref<144x128xbf16, #tpu.memory_space<vmem>>, vector<144x128xbf16>
    %cst = arith.constant dense<0.000000e+00> : vector<256x128xf32>
    %2 = tpu.matmul %0, %1, %cst {dimension_numbers = #tpu.dot_dimension_numbers<[1], [0], [0], [1], [0, 0, 1, 1], [], []>} : vector<256x144xbf16>, vector<144x128xbf16>, vector<256x128xf32> -> vector<256x128xf32>
    %c0_3 = arith.constant 0 : index
    %c0_4 = arith.constant 0 : index
    %3 = vector.load %arg3[%c0_3, %c0_4] : memref<1x128xf32, #tpu.memory_space<vmem>>, vector<1x128xf32>
    %4 = vector.broadcast %3 : vector<1x128xf32> to vector<256x128xf32>
    %5 = arith.addf %2, %4 : vector<256x128xf32>
    %c0_5 = arith.constant 0 : index
    %c0_6 = arith.constant 0 : index
    %6 = vector.load %arg4[%c0_5, %c0_6] : memref<256x128xf32, #tpu.memory_space<vmem>>, vector<256x128xf32>
    %7 = arith.addf %5, %6 : vector<256x128xf32>
    %cst_7 = arith.constant 0.000000e+00 : f32
    %8 = vector.broadcast %cst_7 : f32 to vector<256x128xf32>
    %9 = arith.maximumf %7, %8 : vector<256x128xf32>
    %c0_8 = arith.constant 0 : index
    %c0_9 = arith.constant 0 : index
    %10 = vector.load %arg5[%c0_8, %c0_9] : memref<256x128xf32, #tpu.memory_space<vmem>>, vector<256x128xf32>
    tpu.vector_store %arg5[%c0_8, %c0_9], %9 {strides = array<i32>} : memref<256x128xf32, #tpu.memory_space<vmem>>, vector<256x128xf32>,
    return
  }
  func.func @transform_0(%arg0: i32) -> (i32, i32) {
    %c0_i32 = arith.constant 0 : i32
    %c0_i32_0 = arith.constant 0 : i32
    return %arg0, %c0_i32 : i32, i32
  }
  func.func @transform_1(%arg0: i32) -> (i32, i32) {
    %c0_i32 = arith.constant 0 : i32
    %c0_i32_0 = arith.constant 0 : i32
    %c0_i32_1 = arith.constant 0 : i32
    return %c0_i32, %c0_i32_0 : i32, i32
  }
  func.func @transform_2(%arg0: i32) -> (i32, i32) {
    %c0_i32 = arith.constant 0 : i32
    %c0_i32_0 = arith.constant 0 : i32
    %c0_i32_1 = arith.constant 0 : i32
    return %c0_i32, %c0_i32_0 : i32, i32
  }
  func.func @transform_3(%arg0: i32) -> (i32, i32) {
    %c0_i32 = arith.constant 0 : i32
    %c0_i32_0 = arith.constant 0 : i32
    return %arg0, %c0_i32 : i32, i32
  }
  func.func @transform_4(%arg0: i32) -> (i32, i32) {
    %c0_i32 = arith.constant 0 : i32
    %c0_i32_0 = arith.constant 0 : i32
    return %arg0, %c0_i32 : i32, i32
  }
}

module attributes {stable_mosaic.version = 11 : i64} {
  func.func @_fused_conv_kernel(%arg0: i32, %arg1: memref<128x144xbf16, #tpu.memory_space<vmem>>, %arg2: memref<144x128xbf16, #tpu.memory_space<vmem>>, %arg3: memref<1x128xf32, #tpu.memory_space<vmem>>, %arg4: memref<128x128xf32, #tpu.memory_space<vmem>>) attributes {dimension_semantics = [#tpu.dimension_semantics<parallel>], iteration_bounds = array<i64: 1>, scalar_prefetch = 0 : i64, scratch_operands = 0 : i64, tpu.core_type = #tpu.core_type<tc>, window_params = [{transform_indices = @transform_0, window_bounds = array<i64: 128, 144>}, {pipeline_mode = #tpu.pipeline_mode<synchronous>, transform_indices = @transform_1, window_bounds = array<i64: 144, 128>}, {pipeline_mode = #tpu.pipeline_mode<synchronous>, transform_indices = @transform_2, window_bounds = array<i64: 1, 128>}, {transform_indices = @transform_3, window_bounds = array<i64: 128, 128>}]} {
    %c0 = arith.constant 0 : index
    %c0_0 = arith.constant 0 : index
    %0 = vector.load %arg1[%c0, %c0_0] : memref<128x144xbf16, #tpu.memory_space<vmem>>, vector<128x144xbf16>
    %c0_1 = arith.constant 0 : index
    %c0_2 = arith.constant 0 : index
    %1 = vector.load %arg2[%c0_1, %c0_2] : memref<144x128xbf16, #tpu.memory_space<vmem>>, vector<144x128xbf16>
    %cst = arith.constant dense<0.000000e+00> : vector<128x128xf32>
    %2 = tpu.matmul %0, %1, %cst {dimension_numbers = #tpu.dot_dimension_numbers<[1], [0], [0], [1], [0, 0, 1, 1], [], []>} : vector<128x144xbf16>, vector<144x128xbf16>, vector<128x128xf32> -> vector<128x128xf32>
    %c0_3 = arith.constant 0 : index
    %c0_4 = arith.constant 0 : index
    %3 = vector.load %arg3[%c0_3, %c0_4] : memref<1x128xf32, #tpu.memory_space<vmem>>, vector<1x128xf32>
    %4 = vector.broadcast %3 : vector<1x128xf32> to vector<128x128xf32>
    %5 = arith.addf %2, %4 : vector<128x128xf32>
    %cst_5 = arith.constant 0.000000e+00 : f32
    %6 = vector.broadcast %cst_5 : f32 to vector<128x128xf32>
    %7 = arith.maximumf %5, %6 : vector<128x128xf32>
    %c0_6 = arith.constant 0 : index
    %c0_7 = arith.constant 0 : index
    %8 = vector.load %arg4[%c0_6, %c0_7] : memref<128x128xf32, #tpu.memory_space<vmem>>, vector<128x128xf32>
    tpu.vector_store %arg4[%c0_6, %c0_7], %7 {strides = array<i32>} : memref<128x128xf32, #tpu.memory_space<vmem>>, vector<128x128xf32>,
    return
  }
  func.func @transform_0(%arg0: i32) -> (i32, i32) {
    %c0_i32 = arith.constant 0 : i32
    %c0_i32_0 = arith.constant 0 : i32
    return %arg0, %c0_i32 : i32, i32
  }
  func.func @transform_1(%arg0: i32) -> (i32, i32) {
    %c0_i32 = arith.constant 0 : i32
    %c0_i32_0 = arith.constant 0 : i32
    %c0_i32_1 = arith.constant 0 : i32
    return %c0_i32, %c0_i32_0 : i32, i32
  }
  func.func @transform_2(%arg0: i32) -> (i32, i32) {
    %c0_i32 = arith.constant 0 : i32
    %c0_i32_0 = arith.constant 0 : i32
    %c0_i32_1 = arith.constant 0 : i32
    return %c0_i32, %c0_i32_0 : i32, i32
  }
  func.func @transform_3(%arg0: i32) -> (i32, i32) {
    %c0_i32 = arith.constant 0 : i32
    %c0_i32_0 = arith.constant 0 : i32
    return %arg0, %c0_i32 : i32, i32
  }
}

module attributes {stable_mosaic.version = 11 : i64} {
  func.func @_fused_conv_kernel(%arg0: i32, %arg1: memref<128x288xbf16, #tpu.memory_space<vmem>>, %arg2: memref<288x128xbf16, #tpu.memory_space<vmem>>, %arg3: memref<1x128xf32, #tpu.memory_space<vmem>>, %arg4: memref<128x16xbf16, #tpu.memory_space<vmem>>, %arg5: memref<16x128xbf16, #tpu.memory_space<vmem>>, %arg6: memref<1x128xf32, #tpu.memory_space<vmem>>, %arg7: memref<128x128xf32, #tpu.memory_space<vmem>>) attributes {dimension_semantics = [#tpu.dimension_semantics<parallel>], iteration_bounds = array<i64: 1>, scalar_prefetch = 0 : i64, scratch_operands = 0 : i64, tpu.core_type = #tpu.core_type<tc>, window_params = [{transform_indices = @transform_0, window_bounds = array<i64: 128, 288>}, {pipeline_mode = #tpu.pipeline_mode<synchronous>, transform_indices = @transform_1, window_bounds = array<i64: 288, 128>}, {pipeline_mode = #tpu.pipeline_mode<synchronous>, transform_indices = @transform_2, window_bounds = array<i64: 1, 128>}, {transform_indices = @transform_3, window_bounds = array<i64: 128, 16>}, {pipeline_mode = #tpu.pipeline_mode<synchronous>, transform_indices = @transform_4, window_bounds = array<i64: 16, 128>}, {pipeline_mode = #tpu.pipeline_mode<synchronous>, transform_indices = @transform_5, window_bounds = array<i64: 1, 128>}, {transform_indices = @transform_6, window_bounds = array<i64: 128, 128>}]} {
    %c0 = arith.constant 0 : index
    %c0_0 = arith.constant 0 : index
    %0 = vector.load %arg1[%c0, %c0_0] : memref<128x288xbf16, #tpu.memory_space<vmem>>, vector<128x288xbf16>
    %c0_1 = arith.constant 0 : index
    %c0_2 = arith.constant 0 : index
    %1 = vector.load %arg2[%c0_1, %c0_2] : memref<288x128xbf16, #tpu.memory_space<vmem>>, vector<288x128xbf16>
    %cst = arith.constant dense<0.000000e+00> : vector<128x128xf32>
    %2 = tpu.matmul %0, %1, %cst {dimension_numbers = #tpu.dot_dimension_numbers<[1], [0], [0], [1], [0, 0, 1, 1], [], []>} : vector<128x288xbf16>, vector<288x128xbf16>, vector<128x128xf32> -> vector<128x128xf32>
    %c0_3 = arith.constant 0 : index
    %c0_4 = arith.constant 0 : index
    %3 = vector.load %arg3[%c0_3, %c0_4] : memref<1x128xf32, #tpu.memory_space<vmem>>, vector<1x128xf32>
    %4 = vector.broadcast %3 : vector<1x128xf32> to vector<128x128xf32>
    %5 = arith.addf %2, %4 : vector<128x128xf32>
    %c0_5 = arith.constant 0 : index
    %c0_6 = arith.constant 0 : index
    %6 = vector.load %arg4[%c0_5, %c0_6] : memref<128x16xbf16, #tpu.memory_space<vmem>>, vector<128x16xbf16>
    %c0_7 = arith.constant 0 : index
    %c0_8 = arith.constant 0 : index
    %7 = vector.load %arg5[%c0_7, %c0_8] : memref<16x128xbf16, #tpu.memory_space<vmem>>, vector<16x128xbf16>
    %cst_9 = arith.constant dense<0.000000e+00> : vector<128x128xf32>
    %8 = tpu.matmul %6, %7, %cst_9 {dimension_numbers = #tpu.dot_dimension_numbers<[1], [0], [0], [1], [0, 0, 1, 1], [], []>} : vector<128x16xbf16>, vector<16x128xbf16>, vector<128x128xf32> -> vector<128x128xf32>
    %9 = arith.addf %5, %8 : vector<128x128xf32>
    %c0_10 = arith.constant 0 : index
    %c0_11 = arith.constant 0 : index
    %10 = vector.load %arg6[%c0_10, %c0_11] : memref<1x128xf32, #tpu.memory_space<vmem>>, vector<1x128xf32>
    %11 = vector.broadcast %10 : vector<1x128xf32> to vector<128x128xf32>
    %12 = arith.addf %9, %11 : vector<128x128xf32>
    %cst_12 = arith.constant 0.000000e+00 : f32
    %13 = vector.broadcast %cst_12 : f32 to vector<128x128xf32>
    %14 = arith.maximumf %12, %13 : vector<128x128xf32>
    %c0_13 = arith.constant 0 : index
    %c0_14 = arith.constant 0 : index
    %15 = vector.load %arg7[%c0_13, %c0_14] : memref<128x128xf32, #tpu.memory_space<vmem>>, vector<128x128xf32>
    tpu.vector_store %arg7[%c0_13, %c0_14], %14 {strides = array<i32>} : memref<128x128xf32, #tpu.memory_space<vmem>>, vector<128x128xf32>,
    return
  }
  func.func @transform_0(%arg0: i32) -> (i32, i32) {
    %c0_i32 = arith.constant 0 : i32
    %c0_i32_0 = arith.constant 0 : i32
    return %arg0, %c0_i32 : i32, i32
  }
  func.func @transform_1(%arg0: i32) -> (i32, i32) {
    %c0_i32 = arith.constant 0 : i32
    %c0_i32_0 = arith.constant 0 : i32
    %c0_i32_1 = arith.constant 0 : i32
    return %c0_i32, %c0_i32_0 : i32, i32
  }
  func.func @transform_2(%arg0: i32) -> (i32, i32) {
    %c0_i32 = arith.constant 0 : i32
    %c0_i32_0 = arith.constant 0 : i32
    %c0_i32_1 = arith.constant 0 : i32
    return %c0_i32, %c0_i32_0 : i32, i32
  }
  func.func @transform_3(%arg0: i32) -> (i32, i32) {
    %c0_i32 = arith.constant 0 : i32
    %c0_i32_0 = arith.constant 0 : i32
    return %arg0, %c0_i32 : i32, i32
  }
  func.func @transform_4(%arg0: i32) -> (i32, i32) {
    %c0_i32 = arith.constant 0 : i32
    %c0_i32_0 = arith.constant 0 : i32
    %c0_i32_1 = arith.constant 0 : i32
    return %c0_i32, %c0_i32_0 : i32, i32
  }
  func.func @transform_5(%arg0: i32) -> (i32, i32) {
    %c0_i32 = arith.constant 0 : i32
    %c0_i32_0 = arith.constant 0 : i32
    %c0_i32_1 = arith.constant 0 : i32
    return %c0_i32, %c0_i32_0 : i32, i32
  }
  func.func @transform_6(%arg0: i32) -> (i32, i32) {
    %c0_i32 = arith.constant 0 : i32
    %c0_i32_0 = arith.constant 0 : i32
    return %arg0, %c0_i32 : i32, i32
  }
}

</mosaic_0001>

<llo_original>
// kernel: encoder_forward.5
$region0: #{encoder_forward.5}
  #allocation0 [shape = 'u32[]', space=smem, size = 0x4, offset = 0x4, fixed_abs, tag = 'smem constant byte address 0x4 - core index']
  #allocation1 [shape = 'u32[72,128]{1,0:T(1,128)}', space=vmem, size = 0x9000, scoped, tag = 'internal scratch']
  %s0 = inlined_call_operand.vmem [shape: bf16[512,32], index: 0, kind: input, shape index: {}]
  %s1 = inlined_call_operand.vmem [shape: bf16[32,128], index: 1, kind: input, shape index: {}]
  %s2 = inlined_call_operand.vmem [shape: f32[1,128], index: 2, kind: input, shape index: {}]
  %s3 = inlined_call_operand.vmem [shape: f32[512,128], index: 3, kind: output, shape index: {}]
  %s4 = sld [smem:[#allocation0]]
  $region45: #{encoder_forward.5} parent=0
    _
  %s6 = ssub.s32 1, %s4
  %s7 = scalar_select 0, %s6, %s4
  loop: start=0, step=1, limit=4
  $region2: #{encoder_forward.5} parent=0 // loop_pre_header
    _
  $region3: #{encoder_forward.5} parent=0 // loop_header
    %s9 = sphi 0, %s13
    %p10 = scmp.ge.s32.totalorder %s9, 4
    %s19 = sphi 0, %s21
    %s22 = sphi 0, %s19
    %s23 = sphi 0, %s22
    %s39 = sphi 0, %s23
    %s43 = sphi 0, %s43
    %s45 = sphi 0, %s43
    %s46 = sphi 0, %s45
    %s60 = sphi 0, %s46
    %s64 = sphi 0, %s64
    %s66 = sphi 0, %s64
    %s67 = sphi 0, %s66
    %s81 = sphi 0, %s67
    %s87 = sphi 0, %s89
    %s90 = sphi 0, %s87
    %s91 = sphi 0, %s90
    %s107 = sphi 0, %s91
  $region4: #{encoder_forward.5} parent=0 // loop_header_branch
    %12 = sbr.rel (%p10) target = $region8
  $region5: #{encoder_forward.5} parent=0 // loop_body
    %s14 = ssub.s32 %s9, 1
    %s15 = ssub.s32 %s9, 2
    %s16 = sadd.s32 %s9, 1
    %s17 = ssub.s32 %s9, %s16
    %p18 = scmp.eq.s32.totalorder %s17, 0
    %s20 = sadd.s32 %s19, 1
    %s21 = scalar_select %p18, %s19, %s20
    %p24 = pneg %p18
    %p25 = scmp.eq.s32.totalorder %s9, 1
    %p26 = por %p24, %p25
    %p27 = scmp.ne.s32.totalorder %s19, %s22
    %p28 = scmp.eq.s32.totalorder %s9, 0
    %p29 = por %p27, %p28
    %p30 = scmp.ne.s32.totalorder %s19, %s22
    %p31 = scmp.eq.s32.totalorder %s14, 1
    %p32 = por %p30, %p31
    %p33 = scmp.ne.s32.totalorder %s22, %s23
    %p34 = scmp.eq.s32.totalorder %s14, 0
    %p35 = por %p33, %p34
    %p36 = scmp.ne.s32.totalorder %s22, %s23
    %p37 = scmp.eq.s32.totalorder %s15, 1
    %p38 = por %p36, %p37
    %p40 = scmp.ne.s32.totalorder %s23, %s39
    %p41 = scmp.eq.s32.totalorder %s15, 0
    %p42 = por %p40, %p41
    %s44 = sadd.s32 %s43, 1
    %p47 = scmp.eq.s32.totalorder %s9, 1
    %p48 = scmp.ne.s32.totalorder %s43, %s45
    %p49 = scmp.eq.s32.totalorder %s9, 0
    %p50 = por %p48, %p49
    %p51 = scmp.ne.s32.totalorder %s43, %s45
    %p52 = scmp.eq.s32.totalorder %s14, 1
    %p53 = por %p51, %p52
    %p54 = scmp.ne.s32.totalorder %s45, %s46
    %p55 = scmp.eq.s32.totalorder %s14, 0
    %p56 = por %p54, %p55
    %p57 = scmp.ne.s32.totalorder %s45, %s46
    %p58 = scmp.eq.s32.totalorder %s15, 1
    %p59 = por %p57, %p58
    %p61 = scmp.ne.s32.totalorder %s46, %s60
    %p62 = scmp.eq.s32.totalorder %s15, 0
    %p63 = por %p61, %p62
    %s65 = sadd.s32 %s64, 1
    %p68 = scmp.eq.s32.totalorder %s9, 1
    %p69 = scmp.ne.s32.totalorder %s64, %s66
    %p70 = scmp.eq.s32.totalorder %s9, 0
    %p71 = por %p69, %p70
    %p72 = scmp.ne.s32.totalorder %s64, %s66
    %p73 = scmp.eq.s32.totalorder %s14, 1
    %p74 = por %p72, %p73
    %p75 = scmp.ne.s32.totalorder %s66, %s67
    %p76 = scmp.eq.s32.totalorder %s14, 0
    %p77 = por %p75, %p76
    %p78 = scmp.ne.s32.totalorder %s66, %s67
    %p79 = scmp.eq.s32.totalorder %s15, 1
    %p80 = por %p78, %p79
    %p82 = scmp.ne.s32.totalorder %s67, %s81
    %p83 = scmp.eq.s32.totalorder %s15, 0
    %p84 = por %p82, %p83
    %s85 = ssub.s32 %s9, %s16
    %p86 = scmp.eq.s32.totalorder %s85, 0
    %s88 = sadd.s32 %s87, 1
    %s89 = scalar_select %p86, %s87, %s88
    %p92 = pneg %p86
    %p93 = scmp.eq.s32.totalorder %s9, 1
    %p94 = por %p92, %p93
    %p95 = scmp.ne.s32.totalorder %s87, %s90
    %p96 = scmp.eq.s32.totalorder %s9, 0
    %p97 = por %p95, %p96
    %p98 = scmp.ne.s32.totalorder %s87, %s90
    %p99 = scmp.eq.s32.totalorder %s14, 1
    %p100 = por %p98, %p99
    %p101 = scmp.ne.s32.totalorder %s90, %s91
    %p102 = scmp.eq.s32.totalorder %s14, 0
    %p103 = por %p101, %p102
    %p104 = scmp.ne.s32.totalorder %s90, %s91
    %p105 = scmp.eq.s32.totalorder %s15, 1
    %p106 = por %p104, %p105
    %p108 = scmp.ne.s32.totalorder %s91, %s107
    %p109 = scmp.eq.s32.totalorder %s15, 0
    %p110 = por %p108, %p109
    %p111 = scmp.le.s32.totalorder 1, %s9
    %p112 = scmp.lt.s32.totalorder %s9, 3
    %p113 = pnand %p111, %p112
    %p114 = pneg %p113
    // Predicated region
    $region9: #{encoder_forward.5} parent=5 // pred_check
      _
    $region10: #{encoder_forward.5} parent=5 // pred_check_branch
      %116 = sbr.rel (%p113) target = $region12
    $region11: #{encoder_forward.5} parent=5 // pred_region
      %s117 = ssub.s32 %s9, 1
      // Predicated region
      $region13: #{encoder_forward.5} parent=11 // pred_check
        %p118 = pneg %p56
      $region14: #{encoder_forward.5} parent=11 // pred_check_branch
        %120 = sbr.rel (%p118) target = $region16
      $region15: #{encoder_forward.5} parent=11 // pred_region
        _
      $region16: #{encoder_forward.5} parent=11 // pred_fallthru
        _
      // Predicated region
      $region17: #{encoder_forward.5} parent=11 // pred_check
        %p121 = pneg %p77
      $region18: #{encoder_forward.5} parent=11 // pred_check_branch
        %123 = sbr.rel (%p121) target = $region20
      $region19: #{encoder_forward.5} parent=11 // pred_region
        _
      $region20: #{encoder_forward.5} parent=11 // pred_fallthru
        _
    $region12: #{encoder_forward.5} parent=5 // pred_fallthru
      _
    %p124 = scmp.lt.s32.totalorder %s9, 2
    // Predicated region
    $region21: #{encoder_forward.5} parent=5 // pred_check
      %p125 = pneg %p124
    $region22: #{encoder_forward.5} parent=5 // pred_check_branch
      %127 = sbr.rel (%p125) target = $region24
    $region23: #{encoder_forward.5} parent=5 // pred_region
      // Predicated region
      $region25: #{encoder_forward.5} parent=23 // pred_check
        %p128 = pneg %p29
      $region26: #{encoder_forward.5} parent=23 // pred_check_branch
        %130 = sbr.rel (%p128) target = $region28
      $region27: #{encoder_forward.5} parent=23 // pred_region
        %s131 = smul.u32 32, %s9
        %p132 = scmp.lt.s32.totalorder %s131, 63
        %s133 = scalar_select %p132, %s131, 63
        %s134 = smul.addr %s133, 4
        %s135 = scalar_lea.vmem %s0, %s134
        %s136 = smul.u32 32, %s9
      $region28: #{encoder_forward.5} parent=23 // pred_fallthru
        _
    $region24: #{encoder_forward.5} parent=5 // pred_fallthru
      _
    %p137 = scmp.le.s32.totalorder 1, %s9
    %p138 = scmp.lt.s32.totalorder %s9, 3
    %p139 = pnand %p137, %p138
    %p140 = pneg %p139
    // Predicated region
    $region29: #{encoder_forward.5} parent=5 // pred_check
      _
    $region30: #{encoder_forward.5} parent=5 // pred_check_branch
      %142 = sbr.rel (%p139) target = $region32
    $region31: #{encoder_forward.5} parent=5 // pred_region
      %s143 = ssub.s32 %s9, 1
      %s144 = smul.u32 32, %s14
      %p145 = scmp.lt.s32.totalorder %s144, 63
      %s146 = scalar_select %p145, %s144, 63
      %s147 = smul.addr %s146, 4
      %s148 = scalar_lea.vmem %s0, %s147
      %p149 = pneg %p35
      %p150 = pneg %p32
      %p151 = pneg %p56
      %p152 = pneg %p53
      %p153 = pneg %p77
      %p154 = pneg %p74
      %p155 = pneg %p103
      %p156 = pneg %p100
      %s157 = smul.u32 32, %s14
      %p158 = scmp.lt.s32.totalorder %s157, 63
      %s159 = scalar_select %p158, %s157, 63
      %s160 = smul.addr %s159, 8
      %s161 = scalar_lea.vmem %s3, %s160
      %s162 = smul.u32 32, %s14
      %p163 = scmp.lt.s32.totalorder %s162, 63
      %s164 = scalar_select %p163, %s162, 63
      %s165 = smul.addr %s164, 4
      %s166 = scalar_lea.vmem %s0, %s165
      %s167 = smul.u32 32, %s14
      %s168 = smul.u32 32, %s14
      %p169 = scmp.lt.s32.totalorder %s168, 63
      %s170 = scalar_select %p169, %s168, 63
      %s171 = smul.addr %s170, 8
      %s172 = scalar_lea.vmem %s3, %s171
      %s173 = smul.u32 32, %s14
      %v175 = vld [vmem:[%s166] sm:$0xf]
      %v176 = vld [vmem:[%s166 + $0x4] sm:$0xf]
      %v177 = vld [vmem:[%s166 + $0x8] sm:$0xf]
      %v178 = vld [vmem:[%s166 + $0xc] sm:$0xf]
      %v179 = vld [vmem:[%s166 + $0x10] sm:$0xf]
      %v180 = vld [vmem:[%s166 + $0x14] sm:$0xf]
      %v181 = vld [vmem:[%s166 + $0x18] sm:$0xf]
      %v182 = vld [vmem:[%s166 + $0x1c] sm:$0xf]
      %v183 = vld [vmem:[%s166 + $0x20] sm:$0xf]
      %v184 = vld [vmem:[%s166 + $0x24] sm:$0xf]
      %v185 = vld [vmem:[%s166 + $0x28] sm:$0xf]
      %v186 = vld [vmem:[%s166 + $0x2c] sm:$0xf]
      %v187 = vld [vmem:[%s166 + $0x30] sm:$0xf]
      %v188 = vld [vmem:[%s166 + $0x34] sm:$0xf]
      %v189 = vld [vmem:[%s166 + $0x38] sm:$0xf]
      %v190 = vld [vmem:[%s166 + $0x3c] sm:$0xf]
      %v191 = vld [vmem:[%s166 + $0x40] sm:$0xf]
      %v192 = vld [vmem:[%s166 + $0x44] sm:$0xf]
      %v193 = vld [vmem:[%s166 + $0x48] sm:$0xf]
      %v194 = vld [vmem:[%s166 + $0x4c] sm:$0xf]
      %v195 = vld [vmem:[%s166 + $0x50] sm:$0xf]
      %v196 = vld [vmem:[%s166 + $0x54] sm:$0xf]
      %v197 = vld [vmem:[%s166 + $0x58] sm:$0xf]
      %v198 = vld [vmem:[%s166 + $0x5c] sm:$0xf]
      %v199 = vld [vmem:[%s166 + $0x60] sm:$0xf]
      %v200 = vld [vmem:[%s166 + $0x64] sm:$0xf]
      %v201 = vld [vmem:[%s166 + $0x68] sm:$0xf]
      %v202 = vld [vmem:[%s166 + $0x6c] sm:$0xf]
      %v203 = vld [vmem:[%s166 + $0x70] sm:$0xf]
      %v204 = vld [vmem:[%s166 + $0x74] sm:$0xf]
      %v205 = vld [vmem:[%s166 + $0x78] sm:$0xf]
      %v206 = vld [vmem:[%s166 + $0x7c] sm:$0xf]
      %v207 = vld [vmem:[%s1] sm:$0xf]
      %v208 = vld [vmem:[%s1 + $0x4] sm:$0xf]
      %v209 = vld [vmem:[%s1 + $0x8] sm:$0xf]
      %v210 = vld [vmem:[%s1 + $0xc] sm:$0xf]
      %v211 = vld [vmem:[%s2] sm:$0x1]
      %v213 = vperm.slane %v211, 0
      %v247 = vunpack.c.l.b16 %v175
      %v248 = vunpack.c.l.b16 %v176
      %v249 = vunpack.c.l.b16 %v177
      %v250 = vunpack.c.l.b16 %v178
      %v251 = vunpack.c.l.b16 %v179
      %v252 = vunpack.c.l.b16 %v180
      %v253 = vunpack.c.l.b16 %v181
      %v254 = vunpack.c.l.b16 %v182
      %v255 = vunpack.c.l.b16 %v183
      %v256 = vunpack.c.l.b16 %v184
      %v257 = vunpack.c.l.b16 %v185
      %v258 = vunpack.c.l.b16 %v186
      %v259 = vunpack.c.l.b16 %v187
      %v260 = vunpack.c.l.b16 %v188
      %v261 = vunpack.c.l.b16 %v189
      %v262 = vunpack.c.l.b16 %v190
      %v263 = vunpack.c.l.b16 %v191
      %v264 = vunpack.c.l.b16 %v192
      %v265 = vunpack.c.l.b16 %v193
      %v266 = vunpack.c.l.b16 %v194
      %v267 = vunpack.c.l.b16 %v195
      %v268 = vunpack.c.l.b16 %v196
      %v269 = vunpack.c.l.b16 %v197
      %v270 = vunpack.c.l.b16 %v198
      %v271 = vunpack.c.l.b16 %v199
      %v272 = vunpack.c.l.b16 %v200
      %v273 = vunpack.c.l.b16 %v201
      %v274 = vunpack.c.l.b16 %v202
      %v275 = vunpack.c.l.b16 %v203
      %v276 = vunpack.c.l.b16 %v204
      %v277 = vunpack.c.l.b16 %v205
      %v278 = vunpack.c.l.b16 %v206
      %v279 = vpack.c.b16 %v248, %v247
      %v280 = vpack.c.b16 %v250, %v249
      %v281 = vpack.c.b16 %v252, %v251
      %v282 = vpack.c.b16 %v254, %v253
      %v283 = vpack.c.b16 %v256, %v255
      %v284 = vpack.c.b16 %v258, %v257
      %v285 = vpack.c.b16 %v260, %v259
      %v286 = vpack.c.b16 %v262, %v261
      %v287 = vpack.c.b16 %v264, %v263
      %v288 = vpack.c.b16 %v266, %v265
      %v289 = vpack.c.b16 %v268, %v267
      %v290 = vpack.c.b16 %v270, %v269
      %v291 = vpack.c.b16 %v272, %v271
      %v292 = vpack.c.b16 %v274, %v273
      %v293 = vpack.c.b16 %v276, %v275
      %v294 = vpack.c.b16 %v278, %v277
      %v299 = vunpack.c.l.b16 %v207
      %v300 = vunpack.c.l.b16 %v208
      %v301 = vunpack.c.l.b16 %v209
      %v302 = vunpack.c.l.b16 %v210
      %v303 = vpack.c.b16 %v300, %v299
      %v304 = vpack.c.b16 %v302, %v301
      %vm307 = vcmask 261120
      %v309 = vsel %vm307, %v279, 0
      %v312 = vsel %vm307, %v280, 0
      %v315 = vsel %vm307, %v281, 0
      %v318 = vsel %vm307, %v282, 0
      %v321 = vsel %vm307, %v283, 0
      %v324 = vsel %vm307, %v284, 0
      %v327 = vsel %vm307, %v285, 0
      %v330 = vsel %vm307, %v286, 0
      %v333 = vsel %vm307, %v287, 0
      %v336 = vsel %vm307, %v288, 0
      %v339 = vsel %vm307, %v289, 0
      %v342 = vsel %vm307, %v290, 0
      %v345 = vsel %vm307, %v291, 0
      %v348 = vsel %vm307, %v292, 0
      %v351 = vsel %vm307, %v293, 0
      %v354 = vsel %vm307, %v294, 0
      %356 = vmatpush.bf16.msra.mxu0 0
      %357 = vmatpush.bf16.msra.mxu0 0
      %358 = vmatpush.bf16.msra.mxu0 0
      %359 = vmatpush.bf16.msra.mxu0 0
      %360 = vmatpush.bf16.msra.mxu0 0
      %361 = vmatpush.bf16.msra.mxu0 0
      %362 = vmatpush.bf16.msra.mxu0 %v304
      %363 = vmatpush.bf16.msra.mxu0 %v303
      %364 = vmatmul.bf16.gmra.mxu0 %v309
      %v365 = vpop.f32.mrf.mxu0
      %v366 = vadd.f32 %v213, %v365
      %v367 = vpop.f32.mrf.mxu0
      %v368 = vadd.f32 %v213, %v367
      %369 = vmatmul.bf16.gmra.mxu0 %v312
      %v370 = vpop.f32.mrf.mxu0
      %v371 = vadd.f32 %v213, %v370
      %v372 = vpop.f32.mrf.mxu0
      %v373 = vadd.f32 %v213, %v372
      %374 = vmatmul.bf16.gmra.mxu0 %v315
      %v375 = vpop.f32.mrf.mxu0
      %v376 = vadd.f32 %v213, %v375
      %v377 = vpop.f32.mrf.mxu0
      %v378 = vadd.f32 %v213, %v377
      %379 = vmatmul.bf16.gmra.mxu0 %v318
      %v380 = vpop.f32.mrf.mxu0
      %v381 = vadd.f32 %v213, %v380
      %v382 = vpop.f32.mrf.mxu0
      %v383 = vadd.f32 %v213, %v382
      %384 = vmatmul.bf16.gmra.mxu0 %v321
      %v385 = vpop.f32.mrf.mxu0
      %v386 = vadd.f32 %v213, %v385
      %v387 = vpop.f32.mrf.mxu0
      %v388 = vadd.f32 %v213, %v387
      %389 = vmatmul.bf16.gmra.mxu0 %v324
      %v390 = vpop.f32.mrf.mxu0
      %v391 = vadd.f32 %v213, %v390
      %v392 = vpop.f32.mrf.mxu0
      %v393 = vadd.f32 %v213, %v392
      %394 = vmatmul.bf16.gmra.mxu0 %v327
      %v395 = vpop.f32.mrf.mxu0
      %v396 = vadd.f32 %v213, %v395
      %v397 = vpop.f32.mrf.mxu0
      %v398 = vadd.f32 %v213, %v397
      %399 = vmatmul.bf16.gmra.mxu0 %v330
      %v400 = vpop.f32.mrf.mxu0
      %v401 = vadd.f32 %v213, %v400
      %v402 = vpop.f32.mrf.mxu0
      %v403 = vadd.f32 %v213, %v402
      %404 = vmatmul.bf16.gmra.mxu0 %v333
      %v405 = vpop.f32.mrf.mxu0
      %v406 = vadd.f32 %v213, %v405
      %v407 = vpop.f32.mrf.mxu0
      %v408 = vadd.f32 %v213, %v407
      %409 = vmatmul.bf16.gmra.mxu0 %v336
      %v410 = vpop.f32.mrf.mxu0
      %v411 = vadd.f32 %v213, %v410
      %v412 = vpop.f32.mrf.mxu0
      %v413 = vadd.f32 %v213, %v412
      %414 = vmatmul.bf16.gmra.mxu0 %v339
      %v415 = vpop.f32.mrf.mxu0
      %v416 = vadd.f32 %v213, %v415
      %v417 = vpop.f32.mrf.mxu0
      %v418 = vadd.f32 %v213, %v417
      %419 = vmatmul.bf16.gmra.mxu0 %v342
      %v420 = vpop.f32.mrf.mxu0
      %v421 = vadd.f32 %v213, %v420
      %v422 = vpop.f32.mrf.mxu0
      %v423 = vadd.f32 %v213, %v422
      %424 = vmatmul.bf16.gmra.mxu0 %v345
      %v425 = vpop.f32.mrf.mxu0
      %v426 = vadd.f32 %v213, %v425
      %v427 = vpop.f32.mrf.mxu0
      %v428 = vadd.f32 %v213, %v427
      %429 = vmatmul.bf16.gmra.mxu0 %v348
      %v430 = vpop.f32.mrf.mxu0
      %v431 = vadd.f32 %v213, %v430
      %v432 = vpop.f32.mrf.mxu0
      %v433 = vadd.f32 %v213, %v432
      %434 = vmatmul.bf16.gmra.mxu0 %v351
      %v435 = vpop.f32.mrf.mxu0
      %v436 = vadd.f32 %v213, %v435
      %v437 = vpop.f32.mrf.mxu0
      %v438 = vadd.f32 %v213, %v437
      %439 = vmatmul.bf16.gmra.mxu0 %v354
      %v440 = vpop.f32.mrf.mxu0
      %v441 = vadd.f32 %v213, %v440
      %v442 = vpop.f32.mrf.mxu0
      %v443 = vadd.f32 %v213, %v442
      %444 = vdwg.mxu0
      %v445 = vmax.f32 %v366, 0.0
      %v446 = vmax.f32 %v368, 0.0
      %v447 = vmax.f32 %v371, 0.0
      %v448 = vmax.f32 %v373, 0.0
      %v449 = vmax.f32 %v376, 0.0
      %v450 = vmax.f32 %v378, 0.0
      %v451 = vmax.f32 %v381, 0.0
      %v452 = vmax.f32 %v383, 0.0
      %v453 = vmax.f32 %v386, 0.0
      %v454 = vmax.f32 %v388, 0.0
      %v455 = vmax.f32 %v391, 0.0
      %v456 = vmax.f32 %v393, 0.0
      %v457 = vmax.f32 %v396, 0.0
      %v458 = vmax.f32 %v398, 0.0
      %v459 = vmax.f32 %v401, 0.0
      %v460 = vmax.f32 %v403, 0.0
      %v461 = vmax.f32 %v406, 0.0
      %v462 = vmax.f32 %v408, 0.0
      %v463 = vmax.f32 %v411, 0.0
      %v464 = vmax.f32 %v413, 0.0
      %v465 = vmax.f32 %v416, 0.0
      %v466 = vmax.f32 %v418, 0.0
      %v467 = vmax.f32 %v421, 0.0
      %v468 = vmax.f32 %v423, 0.0
      %v469 = vmax.f32 %v426, 0.0
      %v470 = vmax.f32 %v428, 0.0
      %v471 = vmax.f32 %v431, 0.0
      %v472 = vmax.f32 %v433, 0.0
      %v473 = vmax.f32 %v436, 0.0
      %v474 = vmax.f32 %v438, 0.0
      %v475 = vmax.f32 %v441, 0.0
      %v476 = vmax.f32 %v443, 0.0
      %477 = vst [vmem:[%s172] sm:$0xff] %v445
      %478 = vst [vmem:[%s172 + $0x8] sm:$0xff] %v446
      %479 = vst [vmem:[%s172 + $0x10] sm:$0xff] %v447
      %480 = vst [vmem:[%s172 + $0x18] sm:$0xff] %v448
      %481 = vst [vmem:[%s172 + $0x20] sm:$0xff] %v449
      %482 = vst [vmem:[%s172 + $0x28] sm:$0xff] %v450
      %483 = vst [vmem:[%s172 + $0x30] sm:$0xff] %v451
      %484 = vst [vmem:[%s172 + $0x38] sm:$0xff] %v452
      %485 = vst [vmem:[%s172 + $0x40] sm:$0xff] %v453
      %486 = vst [vmem:[%s172 + $0x48] sm:$0xff] %v454
      %487 = vst [vmem:[%s172 + $0x50] sm:$0xff] %v455
      %488 = vst [vmem:[%s172 + $0x58] sm:$0xff] %v456
      %489 = vst [vmem:[%s172 + $0x60] sm:$0xff] %v457
      %490 = vst [vmem:[%s172 + $0x68] sm:$0xff] %v458
      %491 = vst [vmem:[%s172 + $0x70] sm:$0xff] %v459
      %492 = vst [vmem:[%s172 + $0x78] sm:$0xff] %v460
      %493 = vst [vmem:[%s172 + $0x80] sm:$0xff] %v461
      %494 = vst [vmem:[%s172 + $0x88] sm:$0xff] %v462
      %495 = vst [vmem:[%s172 + $0x90] sm:$0xff] %v463
      %496 = vst [vmem:[%s172 + $0x98] sm:$0xff] %v464
      %497 = vst [vmem:[%s172 + $0xa0] sm:$0xff] %v465
      %498 = vst [vmem:[%s172 + $0xa8] sm:$0xff] %v466
      %499 = vst [vmem:[%s172 + $0xb0] sm:$0xff] %v467
      %500 = vst [vmem:[%s172 + $0xb8] sm:$0xff] %v468
      %501 = vst [vmem:[%s172 + $0xc0] sm:$0xff] %v469
      %502 = vst [vmem:[%s172 + $0xc8] sm:$0xff] %v470
      %503 = vst [vmem:[%s172 + $0xd0] sm:$0xff] %v471
      %504 = vst [vmem:[%s172 + $0xd8] sm:$0xff] %v472
      %505 = vst [vmem:[%s172 + $0xe0] sm:$0xff] %v473
      %506 = vst [vmem:[%s172 + $0xe8] sm:$0xff] %v474
      %507 = vst [vmem:[%s172 + $0xf0] sm:$0xff] %v475
      %508 = vst [vmem:[%s172 + $0xf8] sm:$0xff] %v476
      %s509 = smul.u32 32, %s14
      %p510 = scmp.lt.s32.totalorder %s509, 63
      %s511 = scalar_select %p510, %s509, 63
      %s512 = smul.addr %s511, 8
      %s513 = scalar_lea.vmem %s3, %s512
      // Predicated region
      $region33: #{encoder_forward.5} parent=31 // pred_check
        %p514 = pneg %p100
      $region34: #{encoder_forward.5} parent=31 // pred_check_branch
        %516 = sbr.rel (%p514) target = $region36
      $region35: #{encoder_forward.5} parent=31 // pred_region
        %s517 = smul.u32 32, %s14
      $region36: #{encoder_forward.5} parent=31 // pred_fallthru
        _
    $region32: #{encoder_forward.5} parent=5 // pred_fallthru
      _
    %p518 = scmp.le.s32.totalorder 2, %s9
    // Predicated region
    $region37: #{encoder_forward.5} parent=5 // pred_check
      %p519 = pneg %p518
    $region38: #{encoder_forward.5} parent=5 // pred_check_branch
      %521 = sbr.rel (%p519) target = $region40
    $region39: #{encoder_forward.5} parent=5 // pred_region
      %s522 = ssub.s32 %s9, 2
      // Predicated region
      $region41: #{encoder_forward.5} parent=39 // pred_check
        %p523 = pneg %p106
      $region42: #{encoder_forward.5} parent=39 // pred_check_branch
        %525 = sbr.rel (%p523) target = $region44
      $region43: #{encoder_forward.5} parent=39 // pred_region
        %s526 = smul.u32 32, %s15
        %p527 = scmp.lt.s32.totalorder %s526, 63
        %s528 = scalar_select %p527, %s526, 63
        %s529 = smul.addr %s528, 8
        %s530 = scalar_lea.vmem %s3, %s529
      $region44: #{encoder_forward.5} parent=39 // pred_fallthru
        _
    $region40: #{encoder_forward.5} parent=5 // pred_fallthru
      _
  $region6: #{encoder_forward.5} parent=0 // loop_footer
    %s13 = sadd.s32 1, %s9
  $region7: #{encoder_forward.5} parent=0 // loop_footer_branch
    %8 = sbr.rel target = $region3
  $region8: #{encoder_forward.5} parent=0 // loop_exit
    _

// kernel: encoder_forward.6
$region0: #{encoder_forward.6}
  #allocation0 [shape = 'u32[]', space=smem, size = 0x4, offset = 0x4, fixed_abs, tag = 'smem constant byte address 0x4 - core index']
  #allocation1 [shape = 'u32[72,128]{1,0:T(1,128)}', space=vmem, size = 0x9000, scoped, tag = 'internal scratch']
  %s0 = inlined_call_operand.vmem [shape: bf16[512,144], index: 0, kind: input, shape index: {}]
  %s1 = inlined_call_operand.vmem [shape: bf16[144,128], index: 1, kind: input, shape index: {}]
  %s2 = inlined_call_operand.vmem [shape: f32[1,128], index: 2, kind: input, shape index: {}]
  %s3 = inlined_call_operand.vmem [shape: f32[512,128], index: 3, kind: output, shape index: {}]
  %s4 = sld [smem:[#allocation0]]
  $region45: #{encoder_forward.6} parent=0
    _
  %s6 = ssub.s32 1, %s4
  %s7 = scalar_select 0, %s6, %s4
  loop: start=0, step=1, limit=4
  $region2: #{encoder_forward.6} parent=0 // loop_pre_header
    _
  $region3: #{encoder_forward.6} parent=0 // loop_header
    %s9 = sphi 0, %s13
    %p10 = scmp.ge.s32.totalorder %s9, 4
    %s19 = sphi 0, %s21
    %s22 = sphi 0, %s19
    %s23 = sphi 0, %s22
    %s39 = sphi 0, %s23
    %s43 = sphi 0, %s43
    %s45 = sphi 0, %s43
    %s46 = sphi 0, %s45
    %s60 = sphi 0, %s46
    %s64 = sphi 0, %s64
    %s66 = sphi 0, %s64
    %s67 = sphi 0, %s66
    %s81 = sphi 0, %s67
    %s87 = sphi 0, %s89
    %s90 = sphi 0, %s87
    %s91 = sphi 0, %s90
    %s107 = sphi 0, %s91
  $region4: #{encoder_forward.6} parent=0 // loop_header_branch
    %12 = sbr.rel (%p10) target = $region8
  $region5: #{encoder_forward.6} parent=0 // loop_body
    %s14 = ssub.s32 %s9, 1
    %s15 = ssub.s32 %s9, 2
    %s16 = sadd.s32 %s9, 1
    %s17 = ssub.s32 %s9, %s16
    %p18 = scmp.eq.s32.totalorder %s17, 0
    %s20 = sadd.s32 %s19, 1
    %s21 = scalar_select %p18, %s19, %s20
    %p24 = pneg %p18
    %p25 = scmp.eq.s32.totalorder %s9, 1
    %p26 = por %p24, %p25
    %p27 = scmp.ne.s32.totalorder %s19, %s22
    %p28 = scmp.eq.s32.totalorder %s9, 0
    %p29 = por %p27, %p28
    %p30 = scmp.ne.s32.totalorder %s19, %s22
    %p31 = scmp.eq.s32.totalorder %s14, 1
    %p32 = por %p30, %p31
    %p33 = scmp.ne.s32.totalorder %s22, %s23
    %p34 = scmp.eq.s32.totalorder %s14, 0
    %p35 = por %p33, %p34
    %p36 = scmp.ne.s32.totalorder %s22, %s23
    %p37 = scmp.eq.s32.totalorder %s15, 1
    %p38 = por %p36, %p37
    %p40 = scmp.ne.s32.totalorder %s23, %s39
    %p41 = scmp.eq.s32.totalorder %s15, 0
    %p42 = por %p40, %p41
    %s44 = sadd.s32 %s43, 1
    %p47 = scmp.eq.s32.totalorder %s9, 1
    %p48 = scmp.ne.s32.totalorder %s43, %s45
    %p49 = scmp.eq.s32.totalorder %s9, 0
    %p50 = por %p48, %p49
    %p51 = scmp.ne.s32.totalorder %s43, %s45
    %p52 = scmp.eq.s32.totalorder %s14, 1
    %p53 = por %p51, %p52
    %p54 = scmp.ne.s32.totalorder %s45, %s46
    %p55 = scmp.eq.s32.totalorder %s14, 0
    %p56 = por %p54, %p55
    %p57 = scmp.ne.s32.totalorder %s45, %s46
    %p58 = scmp.eq.s32.totalorder %s15, 1
    %p59 = por %p57, %p58
    %p61 = scmp.ne.s32.totalorder %s46, %s60
    %p62 = scmp.eq.s32.totalorder %s15, 0
    %p63 = por %p61, %p62
    %s65 = sadd.s32 %s64, 1
    %p68 = scmp.eq.s32.totalorder %s9, 1
    %p69 = scmp.ne.s32.totalorder %s64, %s66
    %p70 = scmp.eq.s32.totalorder %s9, 0
    %p71 = por %p69, %p70
    %p72 = scmp.ne.s32.totalorder %s64, %s66
    %p73 = scmp.eq.s32.totalorder %s14, 1
    %p74 = por %p72, %p73
    %p75 = scmp.ne.s32.totalorder %s66, %s67
    %p76 = scmp.eq.s32.totalorder %s14, 0
    %p77 = por %p75, %p76
    %p78 = scmp.ne.s32.totalorder %s66, %s67
    %p79 = scmp.eq.s32.totalorder %s15, 1
    %p80 = por %p78, %p79
    %p82 = scmp.ne.s32.totalorder %s67, %s81
    %p83 = scmp.eq.s32.totalorder %s15, 0
    %p84 = por %p82, %p83
    %s85 = ssub.s32 %s9, %s16
    %p86 = scmp.eq.s32.totalorder %s85, 0
    %s88 = sadd.s32 %s87, 1
    %s89 = scalar_select %p86, %s87, %s88
    %p92 = pneg %p86
    %p93 = scmp.eq.s32.totalorder %s9, 1
    %p94 = por %p92, %p93
    %p95 = scmp.ne.s32.totalorder %s87, %s90
    %p96 = scmp.eq.s32.totalorder %s9, 0
    %p97 = por %p95, %p96
    %p98 = scmp.ne.s32.totalorder %s87, %s90
    %p99 = scmp.eq.s32.totalorder %s14, 1
    %p100 = por %p98, %p99
    %p101 = scmp.ne.s32.totalorder %s90, %s91
    %p102 = scmp.eq.s32.totalorder %s14, 0
    %p103 = por %p101, %p102
    %p104 = scmp.ne.s32.totalorder %s90, %s91
    %p105 = scmp.eq.s32.totalorder %s15, 1
    %p106 = por %p104, %p105
    %p108 = scmp.ne.s32.totalorder %s91, %s107
    %p109 = scmp.eq.s32.totalorder %s15, 0
    %p110 = por %p108, %p109
    %p111 = scmp.le.s32.totalorder 1, %s9
    %p112 = scmp.lt.s32.totalorder %s9, 3
    %p113 = pnand %p111, %p112
    %p114 = pneg %p113
    // Predicated region
    $region9: #{encoder_forward.6} parent=5 // pred_check
      _
    $region10: #{encoder_forward.6} parent=5 // pred_check_branch
      %116 = sbr.rel (%p113) target = $region12
    $region11: #{encoder_forward.6} parent=5 // pred_region
      %s117 = ssub.s32 %s9, 1
      // Predicated region
      $region13: #{encoder_forward.6} parent=11 // pred_check
        %p118 = pneg %p56
      $region14: #{encoder_forward.6} parent=11 // pred_check_branch
        %120 = sbr.rel (%p118) target = $region16
      $region15: #{encoder_forward.6} parent=11 // pred_region
        _
      $region16: #{encoder_forward.6} parent=11 // pred_fallthru
        _
      // Predicated region
      $region17: #{encoder_forward.6} parent=11 // pred_check
        %p121 = pneg %p77
      $region18: #{encoder_forward.6} parent=11 // pred_check_branch
        %123 = sbr.rel (%p121) target = $region20
      $region19: #{encoder_forward.6} parent=11 // pred_region
        _
      $region20: #{encoder_forward.6} parent=11 // pred_fallthru
        _
    $region12: #{encoder_forward.6} parent=5 // pred_fallthru
      _
    %p124 = scmp.lt.s32.totalorder %s9, 2
    // Predicated region
    $region21: #{encoder_forward.6} parent=5 // pred_check
      %p125 = pneg %p124
    $region22: #{encoder_forward.6} parent=5 // pred_check_branch
      %127 = sbr.rel (%p125) target = $region24
    $region23: #{encoder_forward.6} parent=5 // pred_region
      // Predicated region
      $region25: #{encoder_forward.6} parent=23 // pred_check
        %p128 = pneg %p29
      $region26: #{encoder_forward.6} parent=23 // pred_check_branch
        %130 = sbr.rel (%p128) target = $region28
      $region27: #{encoder_forward.6} parent=23 // pred_region
        %s131 = smul.u32 32, %s9
        %p132 = scmp.lt.s32.totalorder %s131, 63
        %s133 = scalar_select %p132, %s131, 63
        %s134 = smul.addr %s133, 2
        %s135 = smul.addr %s134, 4
        %s136 = scalar_lea.vmem %s0, %s135
        %s137 = smul.u32 32, %s9
      $region28: #{encoder_forward.6} parent=23 // pred_fallthru
        _
    $region24: #{encoder_forward.6} parent=5 // pred_fallthru
      _
    %p138 = scmp.le.s32.totalorder 1, %s9
    %p139 = scmp.lt.s32.totalorder %s9, 3
    %p140 = pnand %p138, %p139
    %p141 = pneg %p140
    // Predicated region
    $region29: #{encoder_forward.6} parent=5 // pred_check
      _
    $region30: #{encoder_forward.6} parent=5 // pred_check_branch
      %143 = sbr.rel (%p140) target = $region32
    $region31: #{encoder_forward.6} parent=5 // pred_region
      %s144 = ssub.s32 %s9, 1
      %s145 = smul.u32 32, %s14
      %p146 = scmp.lt.s32.totalorder %s145, 63
      %s147 = scalar_select %p146, %s145, 63
      %s148 = smul.addr %s147, 2
      %s149 = smul.addr %s148, 4
      %s150 = scalar_lea.vmem %s0, %s149
      %p151 = pneg %p35
      %p152 = pneg %p32
      %p153 = pneg %p56
      %p154 = pneg %p53
      %p155 = pneg %p77
      %p156 = pneg %p74
      %p157 = pneg %p103
      %p158 = pneg %p100
      %s159 = smul.u32 32, %s14
      %p160 = scmp.lt.s32.totalorder %s159, 63
      %s161 = scalar_select %p160, %s159, 63
      %s162 = smul.addr %s161, 8
      %s163 = scalar_lea.vmem %s3, %s162
      %s164 = smul.u32 32, %s14
      %p165 = scmp.lt.s32.totalorder %s164, 63
      %s166 = scalar_select %p165, %s164, 63
      %s167 = smul.addr %s166, 2
      %s168 = smul.addr %s167, 4
      %s169 = scalar_lea.vmem %s0, %s168
      %s170 = smul.u32 32, %s14
      %s171 = smul.u32 32, %s14
      %p172 = scmp.lt.s32.totalorder %s171, 63
      %s173 = scalar_select %p172, %s171, 63
      %s174 = smul.addr %s173, 8
      %s175 = scalar_lea.vmem %s3, %s174
      %s176 = smul.u32 32, %s14
      %v178 = vld [vmem:[%s169] sm:$0xff]
      %v179 = vld [vmem:[%s169 + $0x8] sm:$0xff]
      %v180 = vld [vmem:[%s169 + $0x10] sm:$0xff]
      %v181 = vld [vmem:[%s169 + $0x18] sm:$0xff]
      %v182 = vld [vmem:[%s169 + $0x20] sm:$0xff]
      %v183 = vld [vmem:[%s169 + $0x28] sm:$0xff]
      %v184 = vld [vmem:[%s169 + $0x30] sm:$0xff]
      %v185 = vld [vmem:[%s169 + $0x38] sm:$0xff]
      %v186 = vld [vmem:[%s169 + $0x40] sm:$0xff]
      %v187 = vld [vmem:[%s169 + $0x48] sm:$0xff]
      %v188 = vld [vmem:[%s169 + $0x50] sm:$0xff]
      %v189 = vld [vmem:[%s169 + $0x58] sm:$0xff]
      %v190 = vld [vmem:[%s169 + $0x60] sm:$0xff]
      %v191 = vld [vmem:[%s169 + $0x68] sm:$0xff]
      %v192 = vld [vmem:[%s169 + $0x70] sm:$0xff]
      %v193 = vld [vmem:[%s169 + $0x78] sm:$0xff]
      %v194 = vld [vmem:[%s169 + $0x80] sm:$0xff]
      %v195 = vld [vmem:[%s169 + $0x88] sm:$0xff]
      %v196 = vld [vmem:[%s169 + $0x90] sm:$0xff]
      %v197 = vld [vmem:[%s169 + $0x98] sm:$0xff]
      %v198 = vld [vmem:[%s169 + $0xa0] sm:$0xff]
      %v199 = vld [vmem:[%s169 + $0xa8] sm:$0xff]
      %v200 = vld [vmem:[%s169 + $0xb0] sm:$0xff]
      %v201 = vld [vmem:[%s169 + $0xb8] sm:$0xff]
      %v202 = vld [vmem:[%s169 + $0xc0] sm:$0xff]
      %v203 = vld [vmem:[%s169 + $0xc8] sm:$0xff]
      %v204 = vld [vmem:[%s169 + $0xd0] sm:$0xff]
      %v205 = vld [vmem:[%s169 + $0xd8] sm:$0xff]
      %v206 = vld [vmem:[%s169 + $0xe0] sm:$0xff]
      %v207 = vld [vmem:[%s169 + $0xe8] sm:$0xff]
      %v208 = vld [vmem:[%s169 + $0xf0] sm:$0xff]
      %v209 = vld [vmem:[%s169 + $0xf8] sm:$0xff]
      %v210 = vld [vmem:[%s1] sm:$0xf]
      %v211 = vld [vmem:[%s1 + $0x4] sm:$0xf]
      %v212 = vld [vmem:[%s1 + $0x8] sm:$0xf]
      %v213 = vld [vmem:[%s1 + $0xc] sm:$0xf]
      %v214 = vld [vmem:[%s1 + $0x10] sm:$0xf]
      %v215 = vld [vmem:[%s1 + $0x14] sm:$0xf]
      %v216 = vld [vmem:[%s1 + $0x18] sm:$0xf]
      %v217 = vld [vmem:[%s1 + $0x1c] sm:$0xf]
      %v218 = vld [vmem:[%s1 + $0x20] sm:$0xf]
      %v219 = vld [vmem:[%s1 + $0x24] sm:$0xf]
      %v220 = vld [vmem:[%s1 + $0x28] sm:$0xf]
      %v221 = vld [vmem:[%s1 + $0x2c] sm:$0xf]
      %v222 = vld [vmem:[%s1 + $0x30] sm:$0xf]
      %v223 = vld [vmem:[%s1 + $0x34] sm:$0xf]
      %v224 = vld [vmem:[%s1 + $0x38] sm:$0xf]
      %v225 = vld [vmem:[%s1 + $0x3c] sm:$0xf]
      %v226 = vld [vmem:[%s1 + $0x40] sm:$0xf]
      %v227 = vld [vmem:[%s1 + $0x44] sm:$0xf]
      %v228 = vld [vmem:[%s2] sm:$0x1]
      %v230 = vperm.slane %v228, 0
      %v264 = vunpack.c.l.b16 %v178
      %v265 = vunpack.c.h.b16 %v178
      %v266 = vunpack.c.l.b16 %v179
      %v267 = vunpack.c.h.b16 %v179
      %v268 = vunpack.c.l.b16 %v180
      %v269 = vunpack.c.h.b16 %v180
      %v270 = vunpack.c.l.b16 %v181
      %v271 = vunpack.c.h.b16 %v181
      %v272 = vunpack.c.l.b16 %v182
      %v273 = vunpack.c.h.b16 %v182
      %v274 = vunpack.c.l.b16 %v183
      %v275 = vunpack.c.h.b16 %v183
      %v276 = vunpack.c.l.b16 %v184
      %v277 = vunpack.c.h.b16 %v184
      %v278 = vunpack.c.l.b16 %v185
      %v279 = vunpack.c.h.b16 %v185
      %v280 = vunpack.c.l.b16 %v186
      %v281 = vunpack.c.h.b16 %v186
      %v282 = vunpack.c.l.b16 %v187
      %v283 = vunpack.c.h.b16 %v187
      %v284 = vunpack.c.l.b16 %v188
      %v285 = vunpack.c.h.b16 %v188
      %v286 = vunpack.c.l.b16 %v189
      %v287 = vunpack.c.h.b16 %v189
      %v288 = vunpack.c.l.b16 %v190
      %v289 = vunpack.c.h.b16 %v190
      %v290 = vunpack.c.l.b16 %v191
      %v291 = vunpack.c.h.b16 %v191
      %v292 = vunpack.c.l.b16 %v192
      %v293 = vunpack.c.h.b16 %v192
      %v294 = vunpack.c.l.b16 %v193
      %v295 = vunpack.c.h.b16 %v193
      %v296 = vunpack.c.l.b16 %v194
      %v297 = vunpack.c.h.b16 %v194
      %v298 = vunpack.c.l.b16 %v195
      %v299 = vunpack.c.h.b16 %v195
      %v300 = vunpack.c.l.b16 %v196
      %v301 = vunpack.c.h.b16 %v196
      %v302 = vunpack.c.l.b16 %v197
      %v303 = vunpack.c.h.b16 %v197
      %v304 = vunpack.c.l.b16 %v198
      %v305 = vunpack.c.h.b16 %v198
      %v306 = vunpack.c.l.b16 %v199
      %v307 = vunpack.c.h.b16 %v199
      %v308 = vunpack.c.l.b16 %v200
      %v309 = vunpack.c.h.b16 %v200
      %v310 = vunpack.c.l.b16 %v201
      %v311 = vunpack.c.h.b16 %v201
      %v312 = vunpack.c.l.b16 %v202
      %v313 = vunpack.c.h.b16 %v202
      %v314 = vunpack.c.l.b16 %v203
      %v315 = vunpack.c.h.b16 %v203
      %v316 = vunpack.c.l.b16 %v204
      %v317 = vunpack.c.h.b16 %v204
      %v318 = vunpack.c.l.b16 %v205
      %v319 = vunpack.c.h.b16 %v205
      %v320 = vunpack.c.l.b16 %v206
      %v321 = vunpack.c.h.b16 %v206
      %v322 = vunpack.c.l.b16 %v207
      %v323 = vunpack.c.h.b16 %v207
      %v324 = vunpack.c.l.b16 %v208
      %v325 = vunpack.c.h.b16 %v208
      %v326 = vunpack.c.l.b16 %v209
      %v327 = vunpack.c.h.b16 %v209
      %v328 = vpack.c.b16 %v266, %v264
      %v329 = vpack.c.b16 %v267, %v265
      %v330 = vpack.c.b16 %v270, %v268
      %v331 = vpack.c.b16 %v271, %v269
      %v332 = vpack.c.b16 %v274, %v272
      %v333 = vpack.c.b16 %v275, %v273
      %v334 = vpack.c.b16 %v278, %v276
      %v335 = vpack.c.b16 %v279, %v277
      %v336 = vpack.c.b16 %v282, %v280
      %v337 = vpack.c.b16 %v283, %v281
      %v338 = vpack.c.b16 %v286, %v284
      %v339 = vpack.c.b16 %v287, %v285
      %v340 = vpack.c.b16 %v290, %v288
      %v341 = vpack.c.b16 %v291, %v289
      %v342 = vpack.c.b16 %v294, %v292
      %v343 = vpack.c.b16 %v295, %v293
      %v344 = vpack.c.b16 %v298, %v296
      %v345 = vpack.c.b16 %v299, %v297
      %v346 = vpack.c.b16 %v302, %v300
      %v347 = vpack.c.b16 %v303, %v301
      %v348 = vpack.c.b16 %v306, %v304
      %v349 = vpack.c.b16 %v307, %v305
      %v350 = vpack.c.b16 %v310, %v308
      %v351 = vpack.c.b16 %v311, %v309
      %v352 = vpack.c.b16 %v314, %v312
      %v353 = vpack.c.b16 %v315, %v313
      %v354 = vpack.c.b16 %v318, %v316
      %v355 = vpack.c.b16 %v319, %v317
      %v356 = vpack.c.b16 %v322, %v320
      %v357 = vpack.c.b16 %v323, %v321
      %v358 = vpack.c.b16 %v326, %v324
      %v359 = vpack.c.b16 %v327, %v325
      %v394 = vunpack.c.l.b16 %v210
      %v395 = vunpack.c.l.b16 %v211
      %v396 = vunpack.c.l.b16 %v212
      %v397 = vunpack.c.l.b16 %v213
      %v398 = vunpack.c.l.b16 %v214
      %v399 = vunpack.c.l.b16 %v215
      %v400 = vunpack.c.l.b16 %v216
      %v401 = vunpack.c.l.b16 %v217
      %v402 = vunpack.c.l.b16 %v218
      %v403 = vunpack.c.l.b16 %v219
      %v404 = vunpack.c.l.b16 %v220
      %v405 = vunpack.c.l.b16 %v221
      %v406 = vunpack.c.l.b16 %v222
      %v407 = vunpack.c.l.b16 %v223
      %v408 = vunpack.c.l.b16 %v224
      %v409 = vunpack.c.l.b16 %v225
      %v410 = vunpack.c.l.b16 %v226
      %v411 = vunpack.c.l.b16 %v227
      %v412 = vpack.c.b16 %v395, %v394
      %v413 = vpack.c.b16 %v397, %v396
      %v414 = vpack.c.b16 %v399, %v398
      %v415 = vpack.c.b16 %v401, %v400
      %v416 = vpack.c.b16 %v403, %v402
      %v417 = vpack.c.b16 %v405, %v404
      %v418 = vpack.c.b16 %v407, %v406
      %v419 = vpack.c.b16 %v409, %v408
      %v420 = vpack.c.b16 %v411, %v410
      %vm430 = vcmask 130048
      %v432 = vsel %vm430, %v329, 0
      %v435 = vsel %vm430, %v331, 0
      %v438 = vsel %vm430, %v333, 0
      %v441 = vsel %vm430, %v335, 0
      %v444 = vsel %vm430, %v337, 0
      %v447 = vsel %vm430, %v339, 0
      %v450 = vsel %vm430, %v341, 0
      %v453 = vsel %vm430, %v343, 0
      %v456 = vsel %vm430, %v345, 0
      %v459 = vsel %vm430, %v347, 0
      %v462 = vsel %vm430, %v349, 0
      %v465 = vsel %vm430, %v351, 0
      %v468 = vsel %vm430, %v353, 0
      %v471 = vsel %vm430, %v355, 0
      %v474 = vsel %vm430, %v357, 0
      %v477 = vsel %vm430, %v359, 0
      %479 = vmatpush.bf16.msra.mxu0 %v419
      %480 = vmatpush.bf16.msra.mxu0 %v418
      %481 = vmatpush.bf16.msra.mxu0 %v417
      %482 = vmatpush.bf16.msra.mxu0 %v416
      %483 = vmatpush.bf16.msra.mxu0 %v415
      %484 = vmatpush.bf16.msra.mxu0 %v414
      %485 = vmatpush.bf16.msra.mxu0 %v413
      %486 = vmatpush.bf16.msra.mxu0 %v412
      %487 = vmatmul.bf16.gmra.mxu0 %v328
      %v488 = vpop.f32.mrf.mxu0
      %v489 = vadd.f32 %v230, %v488
      %v490 = vpop.f32.mrf.mxu0
      %v491 = vadd.f32 %v230, %v490
      %492 = vmatmul.bf16.gmra.mxu0 %v330
      %v493 = vpop.f32.mrf.mxu0
      %v494 = vadd.f32 %v230, %v493
      %v495 = vpop.f32.mrf.mxu0
      %v496 = vadd.f32 %v230, %v495
      %497 = vmatmul.bf16.gmra.mxu0 %v332
      %v498 = vpop.f32.mrf.mxu0
      %v499 = vadd.f32 %v230, %v498
      %v500 = vpop.f32.mrf.mxu0
      %v501 = vadd.f32 %v230, %v500
      %502 = vmatmul.bf16.gmra.mxu0 %v334
      %v503 = vpop.f32.mrf.mxu0
      %v504 = vadd.f32 %v230, %v503
      %v505 = vpop.f32.mrf.mxu0
      %v506 = vadd.f32 %v230, %v505
      %507 = vmatmul.bf16.gmra.mxu0 %v336
      %v508 = vpop.f32.mrf.mxu0
      %v509 = vadd.f32 %v230, %v508
      %v510 = vpop.f32.mrf.mxu0
      %v511 = vadd.f32 %v230, %v510
      %512 = vmatmul.bf16.gmra.mxu0 %v338
      %v513 = vpop.f32.mrf.mxu0
      %v514 = vadd.f32 %v230, %v513
      %v515 = vpop.f32.mrf.mxu0
      %v516 = vadd.f32 %v230, %v515
      %517 = vmatmul.bf16.gmra.mxu0 %v340
      %v518 = vpop.f32.mrf.mxu0
      %v519 = vadd.f32 %v230, %v518
      %v520 = vpop.f32.mrf.mxu0
      %v521 = vadd.f32 %v230, %v520
      %522 = vmatmul.bf16.gmra.mxu0 %v342
      %v523 = vpop.f32.mrf.mxu0
      %v524 = vadd.f32 %v230, %v523
      %v525 = vpop.f32.mrf.mxu0
      %v526 = vadd.f32 %v230, %v525
      %527 = vmatmul.bf16.gmra.mxu0 %v344
      %v528 = vpop.f32.mrf.mxu0
      %v529 = vadd.f32 %v230, %v528
      %v530 = vpop.f32.mrf.mxu0
      %v531 = vadd.f32 %v230, %v530
      %532 = vmatmul.bf16.gmra.mxu0 %v346
      %v533 = vpop.f32.mrf.mxu0
      %v534 = vadd.f32 %v230, %v533
      %v535 = vpop.f32.mrf.mxu0
      %v536 = vadd.f32 %v230, %v535
      %537 = vmatmul.bf16.gmra.mxu0 %v348
      %v538 = vpop.f32.mrf.mxu0
      %v539 = vadd.f32 %v230, %v538
      %v540 = vpop.f32.mrf.mxu0
      %v541 = vadd.f32 %v230, %v540
      %542 = vmatmul.bf16.gmra.mxu0 %v350
      %v543 = vpop.f32.mrf.mxu0
      %v544 = vadd.f32 %v230, %v543
      %v545 = vpop.f32.mrf.mxu0
      %v546 = vadd.f32 %v230, %v545
      %547 = vmatmul.bf16.gmra.mxu0 %v352
      %v548 = vpop.f32.mrf.mxu0
      %v549 = vadd.f32 %v230, %v548
      %v550 = vpop.f32.mrf.mxu0
      %v551 = vadd.f32 %v230, %v550
      %552 = vmatmul.bf16.gmra.mxu0 %v354
      %v553 = vpop.f32.mrf.mxu0
      %v554 = vadd.f32 %v230, %v553
      %v555 = vpop.f32.mrf.mxu0
      %v556 = vadd.f32 %v230, %v555
      %557 = vmatmul.bf16.gmra.mxu0 %v356
      %v558 = vpop.f32.mrf.mxu0
      %v559 = vadd.f32 %v230, %v558
      %v560 = vpop.f32.mrf.mxu0
      %v561 = vadd.f32 %v230, %v560
      %562 = vmatmul.bf16.gmra.mxu0 %v358
      %v563 = vpop.f32.mrf.mxu0
      %v564 = vadd.f32 %v230, %v563
      %v565 = vpop.f32.mrf.mxu0
      %v566 = vadd.f32 %v230, %v565
      %567 = vdwg.mxu0
      %568 = vmatpush.bf16.msra.mxu0 0
      %569 = vmatpush.bf16.msra.mxu0 0
      %570 = vmatpush.bf16.msra.mxu0 0
      %571 = vmatpush.bf16.msra.mxu0 0
      %572 = vmatpush.bf16.msra.mxu0 0
      %573 = vmatpush.bf16.msra.mxu0 0
      %574 = vmatpush.bf16.msra.mxu0 0
      %575 = vmatpush.bf16.msra.mxu0 %v420
      %576 = vmatmul.bf16.gmra.mxu0 %v432
      %v577 = vpop.f32.mrf.mxu0
      %v578 = vadd.f32 %v489, %v577
      %v579 = vpop.f32.mrf.mxu0
      %v580 = vadd.f32 %v491, %v579
      %581 = vmatmul.bf16.gmra.mxu0 %v435
      %v582 = vpop.f32.mrf.mxu0
      %v583 = vadd.f32 %v494, %v582
      %v584 = vpop.f32.mrf.mxu0
      %v585 = vadd.f32 %v496, %v584
      %586 = vmatmul.bf16.gmra.mxu0 %v438
      %v587 = vpop.f32.mrf.mxu0
      %v588 = vadd.f32 %v499, %v587
      %v589 = vpop.f32.mrf.mxu0
      %v590 = vadd.f32 %v501, %v589
      %591 = vmatmul.bf16.gmra.mxu0 %v441
      %v592 = vpop.f32.mrf.mxu0
      %v593 = vadd.f32 %v504, %v592
      %v594 = vpop.f32.mrf.mxu0
      %v595 = vadd.f32 %v506, %v594
      %596 = vmatmul.bf16.gmra.mxu0 %v444
      %v597 = vpop.f32.mrf.mxu0
      %v598 = vadd.f32 %v509, %v597
      %v599 = vpop.f32.mrf.mxu0
      %v600 = vadd.f32 %v511, %v599
      %601 = vmatmul.bf16.gmra.mxu0 %v447
      %v602 = vpop.f32.mrf.mxu0
      %v603 = vadd.f32 %v514, %v602
      %v604 = vpop.f32.mrf.mxu0
      %v605 = vadd.f32 %v516, %v604
      %606 = vmatmul.bf16.gmra.mxu0 %v450
      %v607 = vpop.f32.mrf.mxu0
      %v608 = vadd.f32 %v519, %v607
      %v609 = vpop.f32.mrf.mxu0
      %v610 = vadd.f32 %v521, %v609
      %611 = vmatmul.bf16.gmra.mxu0 %v453
      %v612 = vpop.f32.mrf.mxu0
      %v613 = vadd.f32 %v524, %v612
      %v614 = vpop.f32.mrf.mxu0
      %v615 = vadd.f32 %v526, %v614
      %616 = vmatmul.bf16.gmra.mxu0 %v456
      %v617 = vpop.f32.mrf.mxu0
      %v618 = vadd.f32 %v529, %v617
      %v619 = vpop.f32.mrf.mxu0
      %v620 = vadd.f32 %v531, %v619
      %621 = vmatmul.bf16.gmra.mxu0 %v459
      %v622 = vpop.f32.mrf.mxu0
      %v623 = vadd.f32 %v534, %v622
      %v624 = vpop.f32.mrf.mxu0
      %v625 = vadd.f32 %v536, %v624
      %626 = vmatmul.bf16.gmra.mxu0 %v462
      %v627 = vpop.f32.mrf.mxu0
      %v628 = vadd.f32 %v539, %v627
      %v629 = vpop.f32.mrf.mxu0
      %v630 = vadd.f32 %v541, %v629
      %631 = vmatmul.bf16.gmra.mxu0 %v465
      %v632 = vpop.f32.mrf.mxu0
      %v633 = vadd.f32 %v544, %v632
      %v634 = vpop.f32.mrf.mxu0
      %v635 = vadd.f32 %v546, %v634
      %636 = vmatmul.bf16.gmra.mxu0 %v468
      %v637 = vpop.f32.mrf.mxu0
      %v638 = vadd.f32 %v549, %v637
      %v639 = vpop.f32.mrf.mxu0
      %v640 = vadd.f32 %v551, %v639
      %641 = vmatmul.bf16.gmra.mxu0 %v471
      %v642 = vpop.f32.mrf.mxu0
      %v643 = vadd.f32 %v554, %v642
      %v644 = vpop.f32.mrf.mxu0
      %v645 = vadd.f32 %v556, %v644
      %646 = vmatmul.bf16.gmra.mxu0 %v474
      %v647 = vpop.f32.mrf.mxu0
      %v648 = vadd.f32 %v559, %v647
      %v649 = vpop.f32.mrf.mxu0
      %v650 = vadd.f32 %v561, %v649
      %651 = vmatmul.bf16.gmra.mxu0 %v477
      %v652 = vpop.f32.mrf.mxu0
      %v653 = vadd.f32 %v564, %v652
      %v654 = vpop.f32.mrf.mxu0
      %v655 = vadd.f32 %v566, %v654
      %656 = vdwg.mxu0
      %v657 = vmax.f32 %v578, 0.0
      %v658 = vmax.f32 %v580, 0.0
      %v659 = vmax.f32 %v583, 0.0
      %v660 = vmax.f32 %v585, 0.0
      %v661 = vmax.f32 %v588, 0.0
      %v662 = vmax.f32 %v590, 0.0
      %v663 = vmax.f32 %v593, 0.0
      %v664 = vmax.f32 %v595, 0.0
      %v665 = vmax.f32 %v598, 0.0
      %v666 = vmax.f32 %v600, 0.0
      %v667 = vmax.f32 %v603, 0.0
      %v668 = vmax.f32 %v605, 0.0
      %v669 = vmax.f32 %v608, 0.0
      %v670 = vmax.f32 %v610, 0.0
      %v671 = vmax.f32 %v613, 0.0
      %v672 = vmax.f32 %v615, 0.0
      %v673 = vmax.f32 %v618, 0.0
      %v674 = vmax.f32 %v620, 0.0
      %v675 = vmax.f32 %v623, 0.0
      %v676 = vmax.f32 %v625, 0.0
      %v677 = vmax.f32 %v628, 0.0
      %v678 = vmax.f32 %v630, 0.0
      %v679 = vmax.f32 %v633, 0.0
      %v680 = vmax.f32 %v635, 0.0
      %v681 = vmax.f32 %v638, 0.0
      %v682 = vmax.f32 %v640, 0.0
      %v683 = vmax.f32 %v643, 0.0
      %v684 = vmax.f32 %v645, 0.0
      %v685 = vmax.f32 %v648, 0.0
      %v686 = vmax.f32 %v650, 0.0
      %v687 = vmax.f32 %v653, 0.0
      %v688 = vmax.f32 %v655, 0.0
      %689 = vst [vmem:[%s175] sm:$0xff] %v657
      %690 = vst [vmem:[%s175 + $0x8] sm:$0xff] %v658
      %691 = vst [vmem:[%s175 + $0x10] sm:$0xff] %v659
      %692 = vst [vmem:[%s175 + $0x18] sm:$0xff] %v660
      %693 = vst [vmem:[%s175 + $0x20] sm:$0xff] %v661
      %694 = vst [vmem:[%s175 + $0x28] sm:$0xff] %v662
      %695 = vst [vmem:[%s175 + $0x30] sm:$0xff] %v663
      %696 = vst [vmem:[%s175 + $0x38] sm:$0xff] %v664
      %697 = vst [vmem:[%s175 + $0x40] sm:$0xff] %v665
      %698 = vst [vmem:[%s175 + $0x48] sm:$0xff] %v666
      %699 = vst [vmem:[%s175 + $0x50] sm:$0xff] %v667
      %700 = vst [vmem:[%s175 + $0x58] sm:$0xff] %v668
      %701 = vst [vmem:[%s175 + $0x60] sm:$0xff] %v669
      %702 = vst [vmem:[%s175 + $0x68] sm:$0xff] %v670
      %703 = vst [vmem:[%s175 + $0x70] sm:$0xff] %v671
      %704 = vst [vmem:[%s175 + $0x78] sm:$0xff] %v672
      %705 = vst [vmem:[%s175 + $0x80] sm:$0xff] %v673
      %706 = vst [vmem:[%s175 + $0x88] sm:$0xff] %v674
      %707 = vst [vmem:[%s175 + $0x90] sm:$0xff] %v675
      %708 = vst [vmem:[%s175 + $0x98] sm:$0xff] %v676
      %709 = vst [vmem:[%s175 + $0xa0] sm:$0xff] %v677
      %710 = vst [vmem:[%s175 + $0xa8] sm:$0xff] %v678
      %711 = vst [vmem:[%s175 + $0xb0] sm:$0xff] %v679
      %712 = vst [vmem:[%s175 + $0xb8] sm:$0xff] %v680
      %713 = vst [vmem:[%s175 + $0xc0] sm:$0xff] %v681
      %714 = vst [vmem:[%s175 + $0xc8] sm:$0xff] %v682
      %715 = vst [vmem:[%s175 + $0xd0] sm:$0xff] %v683
      %716 = vst [vmem:[%s175 + $0xd8] sm:$0xff] %v684
      %717 = vst [vmem:[%s175 + $0xe0] sm:$0xff] %v685
      %718 = vst [vmem:[%s175 + $0xe8] sm:$0xff] %v686
      %719 = vst [vmem:[%s175 + $0xf0] sm:$0xff] %v687
      %720 = vst [vmem:[%s175 + $0xf8] sm:$0xff] %v688
      %s721 = smul.u32 32, %s14
      %p722 = scmp.lt.s32.totalorder %s721, 63
      %s723 = scalar_select %p722, %s721, 63
      %s724 = smul.addr %s723, 8
      %s725 = scalar_lea.vmem %s3, %s724
      // Predicated region
      $region33: #{encoder_forward.6} parent=31 // pred_check
        %p726 = pneg %p100
      $region34: #{encoder_forward.6} parent=31 // pred_check_branch
        %728 = sbr.rel (%p726) target = $region36
      $region35: #{encoder_forward.6} parent=31 // pred_region
        %s729 = smul.u32 32, %s14
      $region36: #{encoder_forward.6} parent=31 // pred_fallthru
        _
    $region32: #{encoder_forward.6} parent=5 // pred_fallthru
      _
    %p730 = scmp.le.s32.totalorder 2, %s9
    // Predicated region
    $region37: #{encoder_forward.6} parent=5 // pred_check
      %p731 = pneg %p730
    $region38: #{encoder_forward.6} parent=5 // pred_check_branch
      %733 = sbr.rel (%p731) target = $region40
    $region39: #{encoder_forward.6} parent=5 // pred_region
      %s734 = ssub.s32 %s9, 2
      // Predicated region
      $region41: #{encoder_forward.6} parent=39 // pred_check
        %p735 = pneg %p106
      $region42: #{encoder_forward.6} parent=39 // pred_check_branch
        %737 = sbr.rel (%p735) target = $region44
      $region43: #{encoder_forward.6} parent=39 // pred_region
        %s738 = smul.u32 32, %s15
        %p739 = scmp.lt.s32.totalorder %s738, 63
        %s740 = scalar_select %p739, %s738, 63
        %s741 = smul.addr %s740, 8
        %s742 = scalar_lea.vmem %s3, %s741
      $region44: #{encoder_forward.6} parent=39 // pred_fallthru
        _
    $region40: #{encoder_forward.6} parent=5 // pred_fallthru
      _
  $region6: #{encoder_forward.6} parent=0 // loop_footer
    %s13 = sadd.s32 1, %s9
  $region7: #{encoder_forward.6} parent=0 // loop_footer_branch
    %8 = sbr.rel target = $region3
  $region8: #{encoder_forward.6} parent=0 // loop_exit
    _

// kernel: encoder_forward.7
$region0: #{encoder_forward.7}
  #allocation0 [shape = 'u32[]', space=smem, size = 0x4, offset = 0x4, fixed_abs, tag = 'smem constant byte address 0x4 - core index']
  #allocation1 [shape = 'u32[72,128]{1,0:T(1,128)}', space=vmem, size = 0x9000, scoped, tag = 'internal scratch']
  %s0 = inlined_call_operand.vmem [shape: bf16[512,144], index: 0, kind: input, shape index: {}]
  %s1 = inlined_call_operand.vmem [shape: bf16[144,128], index: 1, kind: input, shape index: {}]
  %s2 = inlined_call_operand.vmem [shape: f32[1,128], index: 2, kind: input, shape index: {}]
  %s3 = inlined_call_operand.vmem [shape: f32[512,128], index: 3, kind: input, shape index: {}]
  %s4 = inlined_call_operand.vmem [shape: f32[512,128], index: 4, kind: output, shape index: {}]
  %s5 = sld [smem:[#allocation0]]
  $region49: #{encoder_forward.7} parent=0
    _
  %s7 = ssub.s32 1, %s5
  %s8 = scalar_select 0, %s7, %s5
  loop: start=0, step=1, limit=4
  $region2: #{encoder_forward.7} parent=0 // loop_pre_header
    _
  $region3: #{encoder_forward.7} parent=0 // loop_header
    %s10 = sphi 0, %s14
    %p11 = scmp.ge.s32.totalorder %s10, 4
    %s20 = sphi 0, %s22
    %s23 = sphi 0, %s20
    %s24 = sphi 0, %s23
    %s40 = sphi 0, %s24
    %s44 = sphi 0, %s44
    %s46 = sphi 0, %s44
    %s47 = sphi 0, %s46
    %s61 = sphi 0, %s47
    %s65 = sphi 0, %s65
    %s67 = sphi 0, %s65
    %s68 = sphi 0, %s67
    %s82 = sphi 0, %s68
    %s88 = sphi 0, %s90
    %s91 = sphi 0, %s88
    %s92 = sphi 0, %s91
    %s108 = sphi 0, %s92
    %s114 = sphi 0, %s116
    %s117 = sphi 0, %s114
    %s118 = sphi 0, %s117
    %s134 = sphi 0, %s118
  $region4: #{encoder_forward.7} parent=0 // loop_header_branch
    %13 = sbr.rel (%p11) target = $region8
  $region5: #{encoder_forward.7} parent=0 // loop_body
    %s15 = ssub.s32 %s10, 1
    %s16 = ssub.s32 %s10, 2
    %s17 = sadd.s32 %s10, 1
    %s18 = ssub.s32 %s10, %s17
    %p19 = scmp.eq.s32.totalorder %s18, 0
    %s21 = sadd.s32 %s20, 1
    %s22 = scalar_select %p19, %s20, %s21
    %p25 = pneg %p19
    %p26 = scmp.eq.s32.totalorder %s10, 1
    %p27 = por %p25, %p26
    %p28 = scmp.ne.s32.totalorder %s20, %s23
    %p29 = scmp.eq.s32.totalorder %s10, 0
    %p30 = por %p28, %p29
    %p31 = scmp.ne.s32.totalorder %s20, %s23
    %p32 = scmp.eq.s32.totalorder %s15, 1
    %p33 = por %p31, %p32
    %p34 = scmp.ne.s32.totalorder %s23, %s24
    %p35 = scmp.eq.s32.totalorder %s15, 0
    %p36 = por %p34, %p35
    %p37 = scmp.ne.s32.totalorder %s23, %s24
    %p38 = scmp.eq.s32.totalorder %s16, 1
    %p39 = por %p37, %p38
    %p41 = scmp.ne.s32.totalorder %s24, %s40
    %p42 = scmp.eq.s32.totalorder %s16, 0
    %p43 = por %p41, %p42
    %s45 = sadd.s32 %s44, 1
    %p48 = scmp.eq.s32.totalorder %s10, 1
    %p49 = scmp.ne.s32.totalorder %s44, %s46
    %p50 = scmp.eq.s32.totalorder %s10, 0
    %p51 = por %p49, %p50
    %p52 = scmp.ne.s32.totalorder %s44, %s46
    %p53 = scmp.eq.s32.totalorder %s15, 1
    %p54 = por %p52, %p53
    %p55 = scmp.ne.s32.totalorder %s46, %s47
    %p56 = scmp.eq.s32.totalorder %s15, 0
    %p57 = por %p55, %p56
    %p58 = scmp.ne.s32.totalorder %s46, %s47
    %p59 = scmp.eq.s32.totalorder %s16, 1
    %p60 = por %p58, %p59
    %p62 = scmp.ne.s32.totalorder %s47, %s61
    %p63 = scmp.eq.s32.totalorder %s16, 0
    %p64 = por %p62, %p63
    %s66 = sadd.s32 %s65, 1
    %p69 = scmp.eq.s32.totalorder %s10, 1
    %p70 = scmp.ne.s32.totalorder %s65, %s67
    %p71 = scmp.eq.s32.totalorder %s10, 0
    %p72 = por %p70, %p71
    %p73 = scmp.ne.s32.totalorder %s65, %s67
    %p74 = scmp.eq.s32.totalorder %s15, 1
    %p75 = por %p73, %p74
    %p76 = scmp.ne.s32.totalorder %s67, %s68
    %p77 = scmp.eq.s32.totalorder %s15, 0
    %p78 = por %p76, %p77
    %p79 = scmp.ne.s32.totalorder %s67, %s68
    %p80 = scmp.eq.s32.totalorder %s16, 1
    %p81 = por %p79, %p80
    %p83 = scmp.ne.s32.totalorder %s68, %s82
    %p84 = scmp.eq.s32.totalorder %s16, 0
    %p85 = por %p83, %p84
    %s86 = ssub.s32 %s10, %s17
    %p87 = scmp.eq.s32.totalorder %s86, 0
    %s89 = sadd.s32 %s88, 1
    %s90 = scalar_select %p87, %s88, %s89
    %p93 = pneg %p87
    %p94 = scmp.eq.s32.totalorder %s10, 1
    %p95 = por %p93, %p94
    %p96 = scmp.ne.s32.totalorder %s88, %s91
    %p97 = scmp.eq.s32.totalorder %s10, 0
    %p98 = por %p96, %p97
    %p99 = scmp.ne.s32.totalorder %s88, %s91
    %p100 = scmp.eq.s32.totalorder %s15, 1
    %p101 = por %p99, %p100
    %p102 = scmp.ne.s32.totalorder %s91, %s92
    %p103 = scmp.eq.s32.totalorder %s15, 0
    %p104 = por %p102, %p103
    %p105 = scmp.ne.s32.totalorder %s91, %s92
    %p106 = scmp.eq.s32.totalorder %s16, 1
    %p107 = por %p105, %p106
    %p109 = scmp.ne.s32.totalorder %s92, %s108
    %p110 = scmp.eq.s32.totalorder %s16, 0
    %p111 = por %p109, %p110
    %s112 = ssub.s32 %s10, %s17
    %p113 = scmp.eq.s32.totalorder %s112, 0
    %s115 = sadd.s32 %s114, 1
    %s116 = scalar_select %p113, %s114, %s115
    %p119 = pneg %p113
    %p120 = scmp.eq.s32.totalorder %s10, 1
    %p121 = por %p119, %p120
    %p122 = scmp.ne.s32.totalorder %s114, %s117
    %p123 = scmp.eq.s32.totalorder %s10, 0
    %p124 = por %p122, %p123
    %p125 = scmp.ne.s32.totalorder %s114, %s117
    %p126 = scmp.eq.s32.totalorder %s15, 1
    %p127 = por %p125, %p126
    %p128 = scmp.ne.s32.totalorder %s117, %s118
    %p129 = scmp.eq.s32.totalorder %s15, 0
    %p130 = por %p128, %p129
    %p131 = scmp.ne.s32.totalorder %s117, %s118
    %p132 = scmp.eq.s32.totalorder %s16, 1
    %p133 = por %p131, %p132
    %p135 = scmp.ne.s32.totalorder %s118, %s134
    %p136 = scmp.eq.s32.totalorder %s16, 0
    %p137 = por %p135, %p136
    %p138 = scmp.le.s32.totalorder 1, %s10
    %p139 = scmp.lt.s32.totalorder %s10, 3
    %p140 = pnand %p138, %p139
    %p141 = pneg %p140
    // Predicated region
    $region9: #{encoder_forward.7} parent=5 // pred_check
      _
    $region10: #{encoder_forward.7} parent=5 // pred_check_branch
      %143 = sbr.rel (%p140) target = $region12
    $region11: #{encoder_forward.7} parent=5 // pred_region
      %s144 = ssub.s32 %s10, 1
      // Predicated region
      $region13: #{encoder_forward.7} parent=11 // pred_check
        %p145 = pneg %p57
      $region14: #{encoder_forward.7} parent=11 // pred_check_branch
        %147 = sbr.rel (%p145) target = $region16
      $region15: #{encoder_forward.7} parent=11 // pred_region
        _
      $region16: #{encoder_forward.7} parent=11 // pred_fallthru
        _
      // Predicated region
      $region17: #{encoder_forward.7} parent=11 // pred_check
        %p148 = pneg %p78
      $region18: #{encoder_forward.7} parent=11 // pred_check_branch
        %150 = sbr.rel (%p148) target = $region20
      $region19: #{encoder_forward.7} parent=11 // pred_region
        _
      $region20: #{encoder_forward.7} parent=11 // pred_fallthru
        _
    $region12: #{encoder_forward.7} parent=5 // pred_fallthru
      _
    %p151 = scmp.lt.s32.totalorder %s10, 2
    // Predicated region
    $region21: #{encoder_forward.7} parent=5 // pred_check
      %p152 = pneg %p151
    $region22: #{encoder_forward.7} parent=5 // pred_check_branch
      %154 = sbr.rel (%p152) target = $region24
    $region23: #{encoder_forward.7} parent=5 // pred_region
      // Predicated region
      $region25: #{encoder_forward.7} parent=23 // pred_check
        %p155 = pneg %p30
      $region26: #{encoder_forward.7} parent=23 // pred_check_branch
        %157 = sbr.rel (%p155) target = $region28
      $region27: #{encoder_forward.7} parent=23 // pred_region
        %s158 = smul.u32 32, %s10
        %p159 = scmp.lt.s32.totalorder %s158, 63
        %s160 = scalar_select %p159, %s158, 63
        %s161 = smul.addr %s160, 2
        %s162 = smul.addr %s161, 4
        %s163 = scalar_lea.vmem %s0, %s162
        %s164 = smul.u32 32, %s10
      $region28: #{encoder_forward.7} parent=23 // pred_fallthru
        _
      // Predicated region
      $region29: #{encoder_forward.7} parent=23 // pred_check
        %p165 = pneg %p98
      $region30: #{encoder_forward.7} parent=23 // pred_check_branch
        %167 = sbr.rel (%p165) target = $region32
      $region31: #{encoder_forward.7} parent=23 // pred_region
        %s168 = smul.u32 32, %s10
        %p169 = scmp.lt.s32.totalorder %s168, 63
        %s170 = scalar_select %p169, %s168, 63
        %s171 = smul.addr %s170, 8
        %s172 = scalar_lea.vmem %s3, %s171
        %s173 = smul.u32 32, %s10
      $region32: #{encoder_forward.7} parent=23 // pred_fallthru
        _
    $region24: #{encoder_forward.7} parent=5 // pred_fallthru
      _
    %p174 = scmp.le.s32.totalorder 1, %s10
    %p175 = scmp.lt.s32.totalorder %s10, 3
    %p176 = pnand %p174, %p175
    %p177 = pneg %p176
    // Predicated region
    $region33: #{encoder_forward.7} parent=5 // pred_check
      _
    $region34: #{encoder_forward.7} parent=5 // pred_check_branch
      %179 = sbr.rel (%p176) target = $region36
    $region35: #{encoder_forward.7} parent=5 // pred_region
      %s180 = ssub.s32 %s10, 1
      %s181 = smul.u32 32, %s15
      %p182 = scmp.lt.s32.totalorder %s181, 63
      %s183 = scalar_select %p182, %s181, 63
      %s184 = smul.addr %s183, 2
      %s185 = smul.addr %s184, 4
      %s186 = scalar_lea.vmem %s0, %s185
      %p187 = pneg %p36
      %p188 = pneg %p33
      %p189 = pneg %p57
      %p190 = pneg %p54
      %p191 = pneg %p78
      %p192 = pneg %p75
      %s193 = smul.u32 32, %s15
      %p194 = scmp.lt.s32.totalorder %s193, 63
      %s195 = scalar_select %p194, %s193, 63
      %s196 = smul.addr %s195, 8
      %s197 = scalar_lea.vmem %s3, %s196
      %p198 = pneg %p104
      %p199 = pneg %p101
      %p200 = pneg %p130
      %p201 = pneg %p127
      %s202 = smul.u32 32, %s15
      %p203 = scmp.lt.s32.totalorder %s202, 63
      %s204 = scalar_select %p203, %s202, 63
      %s205 = smul.addr %s204, 8
      %s206 = scalar_lea.vmem %s4, %s205
      %s207 = smul.u32 32, %s15
      %p208 = scmp.lt.s32.totalorder %s207, 63
      %s209 = scalar_select %p208, %s207, 63
      %s210 = smul.addr %s209, 2
      %s211 = smul.addr %s210, 4
      %s212 = scalar_lea.vmem %s0, %s211
      %s213 = smul.u32 32, %s15
      %s214 = smul.u32 32, %s15
      %p215 = scmp.lt.s32.totalorder %s214, 63
      %s216 = scalar_select %p215, %s214, 63
      %s217 = smul.addr %s216, 8
      %s218 = scalar_lea.vmem %s3, %s217
      %s219 = smul.u32 32, %s15
      %s220 = smul.u32 32, %s15
      %p221 = scmp.lt.s32.totalorder %s220, 63
      %s222 = scalar_select %p221, %s220, 63
      %s223 = smul.addr %s222, 8
      %s224 = scalar_lea.vmem %s4, %s223
      %s225 = smul.u32 32, %s15
      %v227 = vld [vmem:[%s212] sm:$0xff]
      %v228 = vld [vmem:[%s212 + $0x8] sm:$0xff]
      %v229 = vld [vmem:[%s212 + $0x10] sm:$0xff]
      %v230 = vld [vmem:[%s212 + $0x18] sm:$0xff]
      %v231 = vld [vmem:[%s212 + $0x20] sm:$0xff]
      %v232 = vld [vmem:[%s212 + $0x28] sm:$0xff]
      %v233 = vld [vmem:[%s212 + $0x30] sm:$0xff]
      %v234 = vld [vmem:[%s212 + $0x38] sm:$0xff]
      %v235 = vld [vmem:[%s212 + $0x40] sm:$0xff]
      %v236 = vld [vmem:[%s212 + $0x48] sm:$0xff]
      %v237 = vld [vmem:[%s212 + $0x50] sm:$0xff]
      %v238 = vld [vmem:[%s212 + $0x58] sm:$0xff]
      %v239 = vld [vmem:[%s212 + $0x60] sm:$0xff]
      %v240 = vld [vmem:[%s212 + $0x68] sm:$0xff]
      %v241 = vld [vmem:[%s212 + $0x70] sm:$0xff]
      %v242 = vld [vmem:[%s212 + $0x78] sm:$0xff]
      %v243 = vld [vmem:[%s212 + $0x80] sm:$0xff]
      %v244 = vld [vmem:[%s212 + $0x88] sm:$0xff]
      %v245 = vld [vmem:[%s212 + $0x90] sm:$0xff]
      %v246 = vld [vmem:[%s212 + $0x98] sm:$0xff]
      %v247 = vld [vmem:[%s212 + $0xa0] sm:$0xff]
      %v248 = vld [vmem:[%s212 + $0xa8] sm:$0xff]
      %v249 = vld [vmem:[%s212 + $0xb0] sm:$0xff]
      %v250 = vld [vmem:[%s212 + $0xb8] sm:$0xff]
      %v251 = vld [vmem:[%s212 + $0xc0] sm:$0xff]
      %v252 = vld [vmem:[%s212 + $0xc8] sm:$0xff]
      %v253 = vld [vmem:[%s212 + $0xd0] sm:$0xff]
      %v254 = vld [vmem:[%s212 + $0xd8] sm:$0xff]
      %v255 = vld [vmem:[%s212 + $0xe0] sm:$0xff]
      %v256 = vld [vmem:[%s212 + $0xe8] sm:$0xff]
      %v257 = vld [vmem:[%s212 + $0xf0] sm:$0xff]
      %v258 = vld [vmem:[%s212 + $0xf8] sm:$0xff]
      %v259 = vld [vmem:[%s1] sm:$0xf]
      %v260 = vld [vmem:[%s1 + $0x4] sm:$0xf]
      %v261 = vld [vmem:[%s1 + $0x8] sm:$0xf]
      %v262 = vld [vmem:[%s1 + $0xc] sm:$0xf]
      %v263 = vld [vmem:[%s1 + $0x10] sm:$0xf]
      %v264 = vld [vmem:[%s1 + $0x14] sm:$0xf]
      %v265 = vld [vmem:[%s1 + $0x18] sm:$0xf]
      %v266 = vld [vmem:[%s1 + $0x1c] sm:$0xf]
      %v267 = vld [vmem:[%s1 + $0x20] sm:$0xf]
      %v268 = vld [vmem:[%s1 + $0x24] sm:$0xf]
      %v269 = vld [vmem:[%s1 + $0x28] sm:$0xf]
      %v270 = vld [vmem:[%s1 + $0x2c] sm:$0xf]
      %v271 = vld [vmem:[%s1 + $0x30] sm:$0xf]
      %v272 = vld [vmem:[%s1 + $0x34] sm:$0xf]
      %v273 = vld [vmem:[%s1 + $0x38] sm:$0xf]
      %v274 = vld [vmem:[%s1 + $0x3c] sm:$0xf]
      %v275 = vld [vmem:[%s1 + $0x40] sm:$0xf]
      %v276 = vld [vmem:[%s1 + $0x44] sm:$0xf]
      %v277 = vld [vmem:[%s2] sm:$0x1]
      %v279 = vperm.slane %v277, 0
      %v313 = vunpack.c.l.b16 %v227
      %v314 = vunpack.c.h.b16 %v227
      %v315 = vunpack.c.l.b16 %v228
      %v316 = vunpack.c.h.b16 %v228
      %v317 = vunpack.c.l.b16 %v229
      %v318 = vunpack.c.h.b16 %v229
      %v319 = vunpack.c.l.b16 %v230
      %v320 = vunpack.c.h.b16 %v230
      %v321 = vunpack.c.l.b16 %v231
      %v322 = vunpack.c.h.b16 %v231
      %v323 = vunpack.c.l.b16 %v232
      %v324 = vunpack.c.h.b16 %v232
      %v325 = vunpack.c.l.b16 %v233
      %v326 = vunpack.c.h.b16 %v233
      %v327 = vunpack.c.l.b16 %v234
      %v328 = vunpack.c.h.b16 %v234
      %v329 = vunpack.c.l.b16 %v235
      %v330 = vunpack.c.h.b16 %v235
      %v331 = vunpack.c.l.b16 %v236
      %v332 = vunpack.c.h.b16 %v236
      %v333 = vunpack.c.l.b16 %v237
      %v334 = vunpack.c.h.b16 %v237
      %v335 = vunpack.c.l.b16 %v238
      %v336 = vunpack.c.h.b16 %v238
      %v337 = vunpack.c.l.b16 %v239
      %v338 = vunpack.c.h.b16 %v239
      %v339 = vunpack.c.l.b16 %v240
      %v340 = vunpack.c.h.b16 %v240
      %v341 = vunpack.c.l.b16 %v241
      %v342 = vunpack.c.h.b16 %v241
      %v343 = vunpack.c.l.b16 %v242
      %v344 = vunpack.c.h.b16 %v242
      %v345 = vunpack.c.l.b16 %v243
      %v346 = vunpack.c.h.b16 %v243
      %v347 = vunpack.c.l.b16 %v244
      %v348 = vunpack.c.h.b16 %v244
      %v349 = vunpack.c.l.b16 %v245
      %v350 = vunpack.c.h.b16 %v245
      %v351 = vunpack.c.l.b16 %v246
      %v352 = vunpack.c.h.b16 %v246
      %v353 = vunpack.c.l.b16 %v247
      %v354 = vunpack.c.h.b16 %v247
      %v355 = vunpack.c.l.b16 %v248
      %v356 = vunpack.c.h.b16 %v248
      %v357 = vunpack.c.l.b16 %v249
      %v358 = vunpack.c.h.b16 %v249
      %v359 = vunpack.c.l.b16 %v250
      %v360 = vunpack.c.h.b16 %v250
      %v361 = vunpack.c.l.b16 %v251
      %v362 = vunpack.c.h.b16 %v251
      %v363 = vunpack.c.l.b16 %v252
      %v364 = vunpack.c.h.b16 %v252
      %v365 = vunpack.c.l.b16 %v253
      %v366 = vunpack.c.h.b16 %v253
      %v367 = vunpack.c.l.b16 %v254
      %v368 = vunpack.c.h.b16 %v254
      %v369 = vunpack.c.l.b16 %v255
      %v370 = vunpack.c.h.b16 %v255
      %v371 = vunpack.c.l.b16 %v256
      %v372 = vunpack.c.h.b16 %v256
      %v373 = vunpack.c.l.b16 %v257
      %v374 = vunpack.c.h.b16 %v257
      %v375 = vunpack.c.l.b16 %v258
      %v376 = vunpack.c.h.b16 %v258
      %v377 = vpack.c.b16 %v315, %v313
      %v378 = vpack.c.b16 %v316, %v314
      %v379 = vpack.c.b16 %v319, %v317
      %v380 = vpack.c.b16 %v320, %v318
      %v381 = vpack.c.b16 %v323, %v321
      %v382 = vpack.c.b16 %v324, %v322
      %v383 = vpack.c.b16 %v327, %v325
      %v384 = vpack.c.b16 %v328, %v326
      %v385 = vpack.c.b16 %v331, %v329
      %v386 = vpack.c.b16 %v332, %v330
      %v387 = vpack.c.b16 %v335, %v333
      %v388 = vpack.c.b16 %v336, %v334
      %v389 = vpack.c.b16 %v339, %v337
      %v390 = vpack.c.b16 %v340, %v338
      %v391 = vpack.c.b16 %v343, %v341
      %v392 = vpack.c.b16 %v344, %v342
      %v393 = vpack.c.b16 %v347, %v345
      %v394 = vpack.c.b16 %v348, %v346
      %v395 = vpack.c.b16 %v351, %v349
      %v396 = vpack.c.b16 %v352, %v350
      %v397 = vpack.c.b16 %v355, %v353
      %v398 = vpack.c.b16 %v356, %v354
      %v399 = vpack.c.b16 %v359, %v357
      %v400 = vpack.c.b16 %v360, %v358
      %v401 = vpack.c.b16 %v363, %v361
      %v402 = vpack.c.b16 %v364, %v362
      %v403 = vpack.c.b16 %v367, %v365
      %v404 = vpack.c.b16 %v368, %v366
      %v405 = vpack.c.b16 %v371, %v369
      %v406 = vpack.c.b16 %v372, %v370
      %v407 = vpack.c.b16 %v375, %v373
      %v408 = vpack.c.b16 %v376, %v374
      %v443 = vunpack.c.l.b16 %v259
      %v444 = vunpack.c.l.b16 %v260
      %v445 = vunpack.c.l.b16 %v261
      %v446 = vunpack.c.l.b16 %v262
      %v447 = vunpack.c.l.b16 %v263
      %v448 = vunpack.c.l.b16 %v264
      %v449 = vunpack.c.l.b16 %v265
      %v450 = vunpack.c.l.b16 %v266
      %v451 = vunpack.c.l.b16 %v267
      %v452 = vunpack.c.l.b16 %v268
      %v453 = vunpack.c.l.b16 %v269
      %v454 = vunpack.c.l.b16 %v270
      %v455 = vunpack.c.l.b16 %v271
      %v456 = vunpack.c.l.b16 %v272
      %v457 = vunpack.c.l.b16 %v273
      %v458 = vunpack.c.l.b16 %v274
      %v459 = vunpack.c.l.b16 %v275
      %v460 = vunpack.c.l.b16 %v276
      %v461 = vpack.c.b16 %v444, %v443
      %v462 = vpack.c.b16 %v446, %v445
      %v463 = vpack.c.b16 %v448, %v447
      %v464 = vpack.c.b16 %v450, %v449
      %v465 = vpack.c.b16 %v452, %v451
      %v466 = vpack.c.b16 %v454, %v453
      %v467 = vpack.c.b16 %v456, %v455
      %v468 = vpack.c.b16 %v458, %v457
      %v469 = vpack.c.b16 %v460, %v459
      %vm479 = vcmask 130048
      %v481 = vsel %vm479, %v378, 0
      %v484 = vsel %vm479, %v380, 0
      %v487 = vsel %vm479, %v382, 0
      %v490 = vsel %vm479, %v384, 0
      %v493 = vsel %vm479, %v386, 0
      %v496 = vsel %vm479, %v388, 0
      %v499 = vsel %vm479, %v390, 0
      %v502 = vsel %vm479, %v392, 0
      %v505 = vsel %vm479, %v394, 0
      %v508 = vsel %vm479, %v396, 0
      %v511 = vsel %vm479, %v398, 0
      %v514 = vsel %vm479, %v400, 0
      %v517 = vsel %vm479, %v402, 0
      %v520 = vsel %vm479, %v404, 0
      %v523 = vsel %vm479, %v406, 0
      %v526 = vsel %vm479, %v408, 0
      %528 = vmatpush.bf16.msra.mxu0 %v468
      %529 = vmatpush.bf16.msra.mxu0 %v467
      %530 = vmatpush.bf16.msra.mxu0 %v466
      %531 = vmatpush.bf16.msra.mxu0 %v465
      %532 = vmatpush.bf16.msra.mxu0 %v464
      %533 = vmatpush.bf16.msra.mxu0 %v463
      %534 = vmatpush.bf16.msra.mxu0 %v462
      %535 = vmatpush.bf16.msra.mxu0 %v461
      %536 = vmatmul.bf16.gmra.mxu0 %v377
      %v537 = vpop.f32.mrf.mxu0
      %v538 = vadd.f32 %v279, %v537
      %v539 = vpop.f32.mrf.mxu0
      %v540 = vadd.f32 %v279, %v539
      %541 = vmatmul.bf16.gmra.mxu0 %v379
      %v542 = vpop.f32.mrf.mxu0
      %v543 = vadd.f32 %v279, %v542
      %v544 = vpop.f32.mrf.mxu0
      %v545 = vadd.f32 %v279, %v544
      %546 = vmatmul.bf16.gmra.mxu0 %v381
      %v547 = vpop.f32.mrf.mxu0
      %v548 = vadd.f32 %v279, %v547
      %v549 = vpop.f32.mrf.mxu0
      %v550 = vadd.f32 %v279, %v549
      %551 = vmatmul.bf16.gmra.mxu0 %v383
      %v552 = vpop.f32.mrf.mxu0
      %v553 = vadd.f32 %v279, %v552
      %v554 = vpop.f32.mrf.mxu0
      %v555 = vadd.f32 %v279, %v554
      %556 = vmatmul.bf16.gmra.mxu0 %v385
      %v557 = vpop.f32.mrf.mxu0
      %v558 = vadd.f32 %v279, %v557
      %v559 = vpop.f32.mrf.mxu0
      %v560 = vadd.f32 %v279, %v559
      %561 = vmatmul.bf16.gmra.mxu0 %v387
      %v562 = vpop.f32.mrf.mxu0
      %v563 = vadd.f32 %v279, %v562
      %v564 = vpop.f32.mrf.mxu0
      %v565 = vadd.f32 %v279, %v564
      %566 = vmatmul.bf16.gmra.mxu0 %v389
      %v567 = vpop.f32.mrf.mxu0
      %v568 = vadd.f32 %v279, %v567
      %v569 = vpop.f32.mrf.mxu0
      %v570 = vadd.f32 %v279, %v569
      %571 = vmatmul.bf16.gmra.mxu0 %v391
      %v572 = vpop.f32.mrf.mxu0
      %v573 = vadd.f32 %v279, %v572
      %v574 = vpop.f32.mrf.mxu0
      %v575 = vadd.f32 %v279, %v574
      %576 = vmatmul.bf16.gmra.mxu0 %v393
      %v577 = vpop.f32.mrf.mxu0
      %v578 = vadd.f32 %v279, %v577
      %v579 = vpop.f32.mrf.mxu0
      %v580 = vadd.f32 %v279, %v579
      %581 = vmatmul.bf16.gmra.mxu0 %v395
      %v582 = vpop.f32.mrf.mxu0
      %v583 = vadd.f32 %v279, %v582
      %v584 = vpop.f32.mrf.mxu0
      %v585 = vadd.f32 %v279, %v584
      %586 = vmatmul.bf16.gmra.mxu0 %v397
      %v587 = vpop.f32.mrf.mxu0
      %v588 = vadd.f32 %v279, %v587
      %v589 = vpop.f32.mrf.mxu0
      %v590 = vadd.f32 %v279, %v589
      %591 = vmatmul.bf16.gmra.mxu0 %v399
      %v592 = vpop.f32.mrf.mxu0
      %v593 = vadd.f32 %v279, %v592
      %v594 = vpop.f32.mrf.mxu0
      %v595 = vadd.f32 %v279, %v594
      %596 = vmatmul.bf16.gmra.mxu0 %v401
      %v597 = vpop.f32.mrf.mxu0
      %v598 = vadd.f32 %v279, %v597
      %v599 = vpop.f32.mrf.mxu0
      %v600 = vadd.f32 %v279, %v599
      %601 = vmatmul.bf16.gmra.mxu0 %v403
      %v602 = vpop.f32.mrf.mxu0
      %v603 = vadd.f32 %v279, %v602
      %v604 = vpop.f32.mrf.mxu0
      %v605 = vadd.f32 %v279, %v604
      %606 = vmatmul.bf16.gmra.mxu0 %v405
      %v607 = vpop.f32.mrf.mxu0
      %v608 = vadd.f32 %v279, %v607
      %v609 = vpop.f32.mrf.mxu0
      %v610 = vadd.f32 %v279, %v609
      %611 = vmatmul.bf16.gmra.mxu0 %v407
      %v612 = vpop.f32.mrf.mxu0
      %v613 = vadd.f32 %v279, %v612
      %v614 = vpop.f32.mrf.mxu0
      %v615 = vadd.f32 %v279, %v614
      %616 = vdwg.mxu0
      %617 = vmatpush.bf16.msra.mxu0 0
      %618 = vmatpush.bf16.msra.mxu0 0
      %619 = vmatpush.bf16.msra.mxu0 0
      %620 = vmatpush.bf16.msra.mxu0 0
      %621 = vmatpush.bf16.msra.mxu0 0
      %622 = vmatpush.bf16.msra.mxu0 0
      %623 = vmatpush.bf16.msra.mxu0 0
      %624 = vmatpush.bf16.msra.mxu0 %v469
      %625 = vmatmul.bf16.gmra.mxu0 %v481
      %v626 = vpop.f32.mrf.mxu0
      %v627 = vadd.f32 %v538, %v626
      %v628 = vpop.f32.mrf.mxu0
      %v629 = vadd.f32 %v540, %v628
      %630 = vmatmul.bf16.gmra.mxu0 %v484
      %v631 = vpop.f32.mrf.mxu0
      %v632 = vadd.f32 %v543, %v631
      %v633 = vpop.f32.mrf.mxu0
      %v634 = vadd.f32 %v545, %v633
      %635 = vmatmul.bf16.gmra.mxu0 %v487
      %v636 = vpop.f32.mrf.mxu0
      %v637 = vadd.f32 %v548, %v636
      %v638 = vpop.f32.mrf.mxu0
      %v639 = vadd.f32 %v550, %v638
      %640 = vmatmul.bf16.gmra.mxu0 %v490
      %v641 = vpop.f32.mrf.mxu0
      %v642 = vadd.f32 %v553, %v641
      %v643 = vpop.f32.mrf.mxu0
      %v644 = vadd.f32 %v555, %v643
      %645 = vmatmul.bf16.gmra.mxu0 %v493
      %v646 = vpop.f32.mrf.mxu0
      %v647 = vadd.f32 %v558, %v646
      %v648 = vpop.f32.mrf.mxu0
      %v649 = vadd.f32 %v560, %v648
      %650 = vmatmul.bf16.gmra.mxu0 %v496
      %v651 = vpop.f32.mrf.mxu0
      %v652 = vadd.f32 %v563, %v651
      %v653 = vpop.f32.mrf.mxu0
      %v654 = vadd.f32 %v565, %v653
      %655 = vmatmul.bf16.gmra.mxu0 %v499
      %v656 = vpop.f32.mrf.mxu0
      %v657 = vadd.f32 %v568, %v656
      %v658 = vpop.f32.mrf.mxu0
      %v659 = vadd.f32 %v570, %v658
      %660 = vmatmul.bf16.gmra.mxu0 %v502
      %v661 = vpop.f32.mrf.mxu0
      %v662 = vadd.f32 %v573, %v661
      %v663 = vpop.f32.mrf.mxu0
      %v664 = vadd.f32 %v575, %v663
      %665 = vmatmul.bf16.gmra.mxu0 %v505
      %v666 = vpop.f32.mrf.mxu0
      %v667 = vadd.f32 %v578, %v666
      %v668 = vpop.f32.mrf.mxu0
      %v669 = vadd.f32 %v580, %v668
      %670 = vmatmul.bf16.gmra.mxu0 %v508
      %v671 = vpop.f32.mrf.mxu0
      %v672 = vadd.f32 %v583, %v671
      %v673 = vpop.f32.mrf.mxu0
      %v674 = vadd.f32 %v585, %v673
      %675 = vmatmul.bf16.gmra.mxu0 %v511
      %v676 = vpop.f32.mrf.mxu0
      %v677 = vadd.f32 %v588, %v676
      %v678 = vpop.f32.mrf.mxu0
      %v679 = vadd.f32 %v590, %v678
      %680 = vmatmul.bf16.gmra.mxu0 %v514
      %v681 = vpop.f32.mrf.mxu0
      %v682 = vadd.f32 %v593, %v681
      %v683 = vpop.f32.mrf.mxu0
      %v684 = vadd.f32 %v595, %v683
      %685 = vmatmul.bf16.gmra.mxu0 %v517
      %v686 = vpop.f32.mrf.mxu0
      %v687 = vadd.f32 %v598, %v686
      %v688 = vpop.f32.mrf.mxu0
      %v689 = vadd.f32 %v600, %v688
      %690 = vmatmul.bf16.gmra.mxu0 %v520
      %v691 = vpop.f32.mrf.mxu0
      %v692 = vadd.f32 %v603, %v691
      %v693 = vpop.f32.mrf.mxu0
      %v694 = vadd.f32 %v605, %v693
      %695 = vmatmul.bf16.gmra.mxu0 %v523
      %v696 = vpop.f32.mrf.mxu0
      %v697 = vadd.f32 %v608, %v696
      %v698 = vpop.f32.mrf.mxu0
      %v699 = vadd.f32 %v610, %v698
      %700 = vmatmul.bf16.gmra.mxu0 %v526
      %v701 = vpop.f32.mrf.mxu0
      %v702 = vadd.f32 %v613, %v701
      %v703 = vpop.f32.mrf.mxu0
      %v704 = vadd.f32 %v615, %v703
      %705 = vdwg.mxu0
      %v706 = vld [vmem:[%s218] sm:$0xff]
      %v707 = vld [vmem:[%s218 + $0x8] sm:$0xff]
      %v708 = vld [vmem:[%s218 + $0x10] sm:$0xff]
      %v709 = vld [vmem:[%s218 + $0x18] sm:$0xff]
      %v710 = vld [vmem:[%s218 + $0x20] sm:$0xff]
      %v711 = vld [vmem:[%s218 + $0x28] sm:$0xff]
      %v712 = vld [vmem:[%s218 + $0x30] sm:$0xff]
      %v713 = vld [vmem:[%s218 + $0x38] sm:$0xff]
      %v714 = vld [vmem:[%s218 + $0x40] sm:$0xff]
      %v715 = vld [vmem:[%s218 + $0x48] sm:$0xff]
      %v716 = vld [vmem:[%s218 + $0x50] sm:$0xff]
      %v717 = vld [vmem:[%s218 + $0x58] sm:$0xff]
      %v718 = vld [vmem:[%s218 + $0x60] sm:$0xff]
      %v719 = vld [vmem:[%s218 + $0x68] sm:$0xff]
      %v720 = vld [vmem:[%s218 + $0x70] sm:$0xff]
      %v721 = vld [vmem:[%s218 + $0x78] sm:$0xff]
      %v722 = vld [vmem:[%s218 + $0x80] sm:$0xff]
      %v723 = vld [vmem:[%s218 + $0x88] sm:$0xff]
      %v724 = vld [vmem:[%s218 + $0x90] sm:$0xff]
      %v725 = vld [vmem:[%s218 + $0x98] sm:$0xff]
      %v726 = vld [vmem:[%s218 + $0xa0] sm:$0xff]
      %v727 = vld [vmem:[%s218 + $0xa8] sm:$0xff]
      %v728 = vld [vmem:[%s218 + $0xb0] sm:$0xff]
      %v729 = vld [vmem:[%s218 + $0xb8] sm:$0xff]
      %v730 = vld [vmem:[%s218 + $0xc0] sm:$0xff]
      %v731 = vld [vmem:[%s218 + $0xc8] sm:$0xff]
      %v732 = vld [vmem:[%s218 + $0xd0] sm:$0xff]
      %v733 = vld [vmem:[%s218 + $0xd8] sm:$0xff]
      %v734 = vld [vmem:[%s218 + $0xe0] sm:$0xff]
      %v735 = vld [vmem:[%s218 + $0xe8] sm:$0xff]
      %v736 = vld [vmem:[%s218 + $0xf0] sm:$0xff]
      %v737 = vld [vmem:[%s218 + $0xf8] sm:$0xff]
      %v738 = vadd.f32 %v627, %v706
      %v739 = vadd.f32 %v629, %v707
      %v740 = vadd.f32 %v632, %v708
      %v741 = vadd.f32 %v634, %v709
      %v742 = vadd.f32 %v637, %v710
      %v743 = vadd.f32 %v639, %v711
      %v744 = vadd.f32 %v642, %v712
      %v745 = vadd.f32 %v644, %v713
      %v746 = vadd.f32 %v647, %v714
      %v747 = vadd.f32 %v649, %v715
      %v748 = vadd.f32 %v652, %v716
      %v749 = vadd.f32 %v654, %v717
      %v750 = vadd.f32 %v657, %v718
      %v751 = vadd.f32 %v659, %v719
      %v752 = vadd.f32 %v662, %v720
      %v753 = vadd.f32 %v664, %v721
      %v754 = vadd.f32 %v667, %v722
      %v755 = vadd.f32 %v669, %v723
      %v756 = vadd.f32 %v672, %v724
      %v757 = vadd.f32 %v674, %v725
      %v758 = vadd.f32 %v677, %v726
      %v759 = vadd.f32 %v679, %v727
      %v760 = vadd.f32 %v682, %v728
      %v761 = vadd.f32 %v684, %v729
      %v762 = vadd.f32 %v687, %v730
      %v763 = vadd.f32 %v689, %v731
      %v764 = vadd.f32 %v692, %v732
      %v765 = vadd.f32 %v694, %v733
      %v766 = vadd.f32 %v697, %v734
      %v767 = vadd.f32 %v699, %v735
      %v768 = vadd.f32 %v702, %v736
      %v769 = vadd.f32 %v704, %v737
      %v770 = vmax.f32 %v738, 0.0
      %v771 = vmax.f32 %v739, 0.0
      %v772 = vmax.f32 %v740, 0.0
      %v773 = vmax.f32 %v741, 0.0
      %v774 = vmax.f32 %v742, 0.0
      %v775 = vmax.f32 %v743, 0.0
      %v776 = vmax.f32 %v744, 0.0
      %v777 = vmax.f32 %v745, 0.0
      %v778 = vmax.f32 %v746, 0.0
      %v779 = vmax.f32 %v747, 0.0
      %v780 = vmax.f32 %v748, 0.0
      %v781 = vmax.f32 %v749, 0.0
      %v782 = vmax.f32 %v750, 0.0
      %v783 = vmax.f32 %v751, 0.0
      %v784 = vmax.f32 %v752, 0.0
      %v785 = vmax.f32 %v753, 0.0
      %v786 = vmax.f32 %v754, 0.0
      %v787 = vmax.f32 %v755, 0.0
      %v788 = vmax.f32 %v756, 0.0
      %v789 = vmax.f32 %v757, 0.0
      %v790 = vmax.f32 %v758, 0.0
      %v791 = vmax.f32 %v759, 0.0
      %v792 = vmax.f32 %v760, 0.0
      %v793 = vmax.f32 %v761, 0.0
      %v794 = vmax.f32 %v762, 0.0
      %v795 = vmax.f32 %v763, 0.0
      %v796 = vmax.f32 %v764, 0.0
      %v797 = vmax.f32 %v765, 0.0
      %v798 = vmax.f32 %v766, 0.0
      %v799 = vmax.f32 %v767, 0.0
      %v800 = vmax.f32 %v768, 0.0
      %v801 = vmax.f32 %v769, 0.0
      %802 = vst [vmem:[%s224] sm:$0xff] %v770
      %803 = vst [vmem:[%s224 + $0x8] sm:$0xff] %v771
      %804 = vst [vmem:[%s224 + $0x10] sm:$0xff] %v772
      %805 = vst [vmem:[%s224 + $0x18] sm:$0xff] %v773
      %806 = vst [vmem:[%s224 + $0x20] sm:$0xff] %v774
      %807 = vst [vmem:[%s224 + $0x28] sm:$0xff] %v775
      %808 = vst [vmem:[%s224 + $0x30] sm:$0xff] %v776
      %809 = vst [vmem:[%s224 + $0x38] sm:$0xff] %v777
      %810 = vst [vmem:[%s224 + $0x40] sm:$0xff] %v778
      %811 = vst [vmem:[%s224 + $0x48] sm:$0xff] %v779
      %812 = vst [vmem:[%s224 + $0x50] sm:$0xff] %v780
      %813 = vst [vmem:[%s224 + $0x58] sm:$0xff] %v781
      %814 = vst [vmem:[%s224 + $0x60] sm:$0xff] %v782
      %815 = vst [vmem:[%s224 + $0x68] sm:$0xff] %v783
      %816 = vst [vmem:[%s224 + $0x70] sm:$0xff] %v784
      %817 = vst [vmem:[%s224 + $0x78] sm:$0xff] %v785
      %818 = vst [vmem:[%s224 + $0x80] sm:$0xff] %v786
      %819 = vst [vmem:[%s224 + $0x88] sm:$0xff] %v787
      %820 = vst [vmem:[%s224 + $0x90] sm:$0xff] %v788
      %821 = vst [vmem:[%s224 + $0x98] sm:$0xff] %v789
      %822 = vst [vmem:[%s224 + $0xa0] sm:$0xff] %v790
      %823 = vst [vmem:[%s224 + $0xa8] sm:$0xff] %v791
      %824 = vst [vmem:[%s224 + $0xb0] sm:$0xff] %v792
      %825 = vst [vmem:[%s224 + $0xb8] sm:$0xff] %v793
      %826 = vst [vmem:[%s224 + $0xc0] sm:$0xff] %v794
      %827 = vst [vmem:[%s224 + $0xc8] sm:$0xff] %v795
      %828 = vst [vmem:[%s224 + $0xd0] sm:$0xff] %v796
      %829 = vst [vmem:[%s224 + $0xd8] sm:$0xff] %v797
      %830 = vst [vmem:[%s224 + $0xe0] sm:$0xff] %v798
      %831 = vst [vmem:[%s224 + $0xe8] sm:$0xff] %v799
      %832 = vst [vmem:[%s224 + $0xf0] sm:$0xff] %v800
      %833 = vst [vmem:[%s224 + $0xf8] sm:$0xff] %v801
      %s834 = smul.u32 32, %s15
      %p835 = scmp.lt.s32.totalorder %s834, 63
      %s836 = scalar_select %p835, %s834, 63
      %s837 = smul.addr %s836, 8
      %s838 = scalar_lea.vmem %s4, %s837
      // Predicated region
      $region37: #{encoder_forward.7} parent=35 // pred_check
        %p839 = pneg %p127
      $region38: #{encoder_forward.7} parent=35 // pred_check_branch
        %841 = sbr.rel (%p839) target = $region40
      $region39: #{encoder_forward.7} parent=35 // pred_region
        %s842 = smul.u32 32, %s15
      $region40: #{encoder_forward.7} parent=35 // pred_fallthru
        _
    $region36: #{encoder_forward.7} parent=5 // pred_fallthru
      _
    %p843 = scmp.le.s32.totalorder 2, %s10
    // Predicated region
    $region41: #{encoder_forward.7} parent=5 // pred_check
      %p844 = pneg %p843
    $region42: #{encoder_forward.7} parent=5 // pred_check_branch
      %846 = sbr.rel (%p844) target = $region44
    $region43: #{encoder_forward.7} parent=5 // pred_region
      %s847 = ssub.s32 %s10, 2
      // Predicated region
      $region45: #{encoder_forward.7} parent=43 // pred_check
        %p848 = pneg %p133
      $region46: #{encoder_forward.7} parent=43 // pred_check_branch
        %850 = sbr.rel (%p848) target = $region48
      $region47: #{encoder_forward.7} parent=43 // pred_region
        %s851 = smul.u32 32, %s16
        %p852 = scmp.lt.s32.totalorder %s851, 63
        %s853 = scalar_select %p852, %s851, 63
        %s854 = smul.addr %s853, 8
        %s855 = scalar_lea.vmem %s4, %s854
      $region48: #{encoder_forward.7} parent=43 // pred_fallthru
        _
    $region44: #{encoder_forward.7} parent=5 // pred_fallthru
      _
  $region6: #{encoder_forward.7} parent=0 // loop_footer
    %s14 = sadd.s32 1, %s10
  $region7: #{encoder_forward.7} parent=0 // loop_footer_branch
    %9 = sbr.rel target = $region3
  $region8: #{encoder_forward.7} parent=0 // loop_exit
    _

// kernel: encoder_forward.8
$region0: #{encoder_forward.8}
  #allocation0 [shape = 'u32[]', space=smem, size = 0x4, offset = 0x4, fixed_abs, tag = 'smem constant byte address 0x4 - core index']
  #allocation1 [shape = 'u32[72,128]{1,0:T(1,128)}', space=vmem, size = 0x9000, scoped, tag = 'internal scratch']
  %s0 = inlined_call_operand.vmem [shape: bf16[128,144], index: 0, kind: input, shape index: {}]
  %s1 = inlined_call_operand.vmem [shape: bf16[144,128], index: 1, kind: input, shape index: {}]
  %s2 = inlined_call_operand.vmem [shape: f32[1,128], index: 2, kind: input, shape index: {}]
  %s3 = inlined_call_operand.vmem [shape: f32[128,128], index: 3, kind: output, shape index: {}]
  %s4 = sld [smem:[#allocation0]]
  $region22: #{encoder_forward.8} parent=0
    _
  %s6 = ssub.s32 1, %s4
  %s7 = scalar_select 0, %s6, %s4
  // Predicated region
  $region2: #{encoder_forward.8} parent=0 // pred_check
    _
  $region3: #{encoder_forward.8} parent=0 // pred_check_branch
    %9 = sbr.rel (0) target = $region5
  $region4: #{encoder_forward.8} parent=0 // pred_region
    _
  $region5: #{encoder_forward.8} parent=0 // pred_fallthru
    _
  // Predicated region
  $region6: #{encoder_forward.8} parent=0 // pred_check
    _
  $region7: #{encoder_forward.8} parent=0 // pred_check_branch
    %11 = sbr.rel (0) target = $region9
  $region8: #{encoder_forward.8} parent=0 // pred_region
    _
  $region9: #{encoder_forward.8} parent=0 // pred_fallthru
    _
  // Predicated region
  $region10: #{encoder_forward.8} parent=0 // pred_check
    _
  $region11: #{encoder_forward.8} parent=0 // pred_check_branch
    %13 = sbr.rel (0) target = $region13
  $region12: #{encoder_forward.8} parent=0 // pred_region
    _
  $region13: #{encoder_forward.8} parent=0 // pred_fallthru
    _
  %v15 = vld [vmem:[%s0] sm:$0xff]
  %v16 = vld [vmem:[%s0 + $0x8] sm:$0xff]
  %v17 = vld [vmem:[%s0 + $0x10] sm:$0xff]
  %v18 = vld [vmem:[%s0 + $0x18] sm:$0xff]
  %v19 = vld [vmem:[%s0 + $0x20] sm:$0xff]
  %v20 = vld [vmem:[%s0 + $0x28] sm:$0xff]
  %v21 = vld [vmem:[%s0 + $0x30] sm:$0xff]
  %v22 = vld [vmem:[%s0 + $0x38] sm:$0xff]
  %v23 = vld [vmem:[%s0 + $0x40] sm:$0xff]
  %v24 = vld [vmem:[%s0 + $0x48] sm:$0xff]
  %v25 = vld [vmem:[%s0 + $0x50] sm:$0xff]
  %v26 = vld [vmem:[%s0 + $0x58] sm:$0xff]
  %v27 = vld [vmem:[%s0 + $0x60] sm:$0xff]
  %v28 = vld [vmem:[%s0 + $0x68] sm:$0xff]
  %v29 = vld [vmem:[%s0 + $0x70] sm:$0xff]
  %v30 = vld [vmem:[%s0 + $0x78] sm:$0xff]
  %v31 = vld [vmem:[%s1] sm:$0xf]
  %v32 = vld [vmem:[%s1 + $0x4] sm:$0xf]
  %v33 = vld [vmem:[%s1 + $0x8] sm:$0xf]
  %v34 = vld [vmem:[%s1 + $0xc] sm:$0xf]
  %v35 = vld [vmem:[%s1 + $0x10] sm:$0xf]
  %v36 = vld [vmem:[%s1 + $0x14] sm:$0xf]
  %v37 = vld [vmem:[%s1 + $0x18] sm:$0xf]
  %v38 = vld [vmem:[%s1 + $0x1c] sm:$0xf]
  %v39 = vld [vmem:[%s1 + $0x20] sm:$0xf]
  %v40 = vld [vmem:[%s1 + $0x24] sm:$0xf]
  %v41 = vld [vmem:[%s1 + $0x28] sm:$0xf]
  %v42 = vld [vmem:[%s1 + $0x2c] sm:$0xf]
  %v43 = vld [vmem:[%s1 + $0x30] sm:$0xf]
  %v44 = vld [vmem:[%s1 + $0x34] sm:$0xf]
  %v45 = vld [vmem:[%s1 + $0x38] sm:$0xf]
  %v46 = vld [vmem:[%s1 + $0x3c] sm:$0xf]
  %v47 = vld [vmem:[%s1 + $0x40] sm:$0xf]
  %v48 = vld [vmem:[%s1 + $0x44] sm:$0xf]
  %v49 = vld [vmem:[%s2] sm:$0x1]
  %v51 = vperm.slane %v49, 0
  %v69 = vunpack.c.l.b16 %v15
  %v70 = vunpack.c.h.b16 %v15
  %v71 = vunpack.c.l.b16 %v16
  %v72 = vunpack.c.h.b16 %v16
  %v73 = vunpack.c.l.b16 %v17
  %v74 = vunpack.c.h.b16 %v17
  %v75 = vunpack.c.l.b16 %v18
  %v76 = vunpack.c.h.b16 %v18
  %v77 = vunpack.c.l.b16 %v19
  %v78 = vunpack.c.h.b16 %v19
  %v79 = vunpack.c.l.b16 %v20
  %v80 = vunpack.c.h.b16 %v20
  %v81 = vunpack.c.l.b16 %v21
  %v82 = vunpack.c.h.b16 %v21
  %v83 = vunpack.c.l.b16 %v22
  %v84 = vunpack.c.h.b16 %v22
  %v85 = vunpack.c.l.b16 %v23
  %v86 = vunpack.c.h.b16 %v23
  %v87 = vunpack.c.l.b16 %v24
  %v88 = vunpack.c.h.b16 %v24
  %v89 = vunpack.c.l.b16 %v25
  %v90 = vunpack.c.h.b16 %v25
  %v91 = vunpack.c.l.b16 %v26
  %v92 = vunpack.c.h.b16 %v26
  %v93 = vunpack.c.l.b16 %v27
  %v94 = vunpack.c.h.b16 %v27
  %v95 = vunpack.c.l.b16 %v28
  %v96 = vunpack.c.h.b16 %v28
  %v97 = vunpack.c.l.b16 %v29
  %v98 = vunpack.c.h.b16 %v29
  %v99 = vunpack.c.l.b16 %v30
  %v100 = vunpack.c.h.b16 %v30
  %v101 = vpack.c.b16 %v71, %v69
  %v102 = vpack.c.b16 %v72, %v70
  %v103 = vpack.c.b16 %v75, %v73
  %v104 = vpack.c.b16 %v76, %v74
  %v105 = vpack.c.b16 %v79, %v77
  %v106 = vpack.c.b16 %v80, %v78
  %v107 = vpack.c.b16 %v83, %v81
  %v108 = vpack.c.b16 %v84, %v82
  %v109 = vpack.c.b16 %v87, %v85
  %v110 = vpack.c.b16 %v88, %v86
  %v111 = vpack.c.b16 %v91, %v89
  %v112 = vpack.c.b16 %v92, %v90
  %v113 = vpack.c.b16 %v95, %v93
  %v114 = vpack.c.b16 %v96, %v94
  %v115 = vpack.c.b16 %v99, %v97
  %v116 = vpack.c.b16 %v100, %v98
  %v143 = vunpack.c.l.b16 %v31
  %v144 = vunpack.c.l.b16 %v32
  %v145 = vunpack.c.l.b16 %v33
  %v146 = vunpack.c.l.b16 %v34
  %v147 = vunpack.c.l.b16 %v35
  %v148 = vunpack.c.l.b16 %v36
  %v149 = vunpack.c.l.b16 %v37
  %v150 = vunpack.c.l.b16 %v38
  %v151 = vunpack.c.l.b16 %v39
  %v152 = vunpack.c.l.b16 %v40
  %v153 = vunpack.c.l.b16 %v41
  %v154 = vunpack.c.l.b16 %v42
  %v155 = vunpack.c.l.b16 %v43
  %v156 = vunpack.c.l.b16 %v44
  %v157 = vunpack.c.l.b16 %v45
  %v158 = vunpack.c.l.b16 %v46
  %v159 = vunpack.c.l.b16 %v47
  %v160 = vunpack.c.l.b16 %v48
  %v161 = vpack.c.b16 %v144, %v143
  %v162 = vpack.c.b16 %v146, %v145
  %v163 = vpack.c.b16 %v148, %v147
  %v164 = vpack.c.b16 %v150, %v149
  %v165 = vpack.c.b16 %v152, %v151
  %v166 = vpack.c.b16 %v154, %v153
  %v167 = vpack.c.b16 %v156, %v155
  %v168 = vpack.c.b16 %v158, %v157
  %v169 = vpack.c.b16 %v160, %v159
  %vm179 = vcmask 130048
  %v181 = vsel %vm179, %v102, 0
  %v184 = vsel %vm179, %v104, 0
  %v187 = vsel %vm179, %v106, 0
  %v190 = vsel %vm179, %v108, 0
  %v193 = vsel %vm179, %v110, 0
  %v196 = vsel %vm179, %v112, 0
  %v199 = vsel %vm179, %v114, 0
  %v202 = vsel %vm179, %v116, 0
  %204 = vmatpush.bf16.msra.mxu0 %v168
  %205 = vmatpush.bf16.msra.mxu0 %v167
  %206 = vmatpush.bf16.msra.mxu0 %v166
  %207 = vmatpush.bf16.msra.mxu0 %v165
  %208 = vmatpush.bf16.msra.mxu0 %v164
  %209 = vmatpush.bf16.msra.mxu0 %v163
  %210 = vmatpush.bf16.msra.mxu0 %v162
  %211 = vmatpush.bf16.msra.mxu0 %v161
  %212 = vmatmul.bf16.gmra.mxu0 %v101
  %v213 = vpop.f32.mrf.mxu0
  %v214 = vadd.f32 %v51, %v213
  %v215 = vpop.f32.mrf.mxu0
  %v216 = vadd.f32 %v51, %v215
  %217 = vmatmul.bf16.gmra.mxu0 %v103
  %v218 = vpop.f32.mrf.mxu0
  %v219 = vadd.f32 %v51, %v218
  %v220 = vpop.f32.mrf.mxu0
  %v221 = vadd.f32 %v51, %v220
  %222 = vmatmul.bf16.gmra.mxu0 %v105
  %v223 = vpop.f32.mrf.mxu0
  %v224 = vadd.f32 %v51, %v223
  %v225 = vpop.f32.mrf.mxu0
  %v226 = vadd.f32 %v51, %v225
  %227 = vmatmul.bf16.gmra.mxu0 %v107
  %v228 = vpop.f32.mrf.mxu0
  %v229 = vadd.f32 %v51, %v228
  %v230 = vpop.f32.mrf.mxu0
  %v231 = vadd.f32 %v51, %v230
  %232 = vmatmul.bf16.gmra.mxu0 %v109
  %v233 = vpop.f32.mrf.mxu0
  %v234 = vadd.f32 %v51, %v233
  %v235 = vpop.f32.mrf.mxu0
  %v236 = vadd.f32 %v51, %v235
  %237 = vmatmul.bf16.gmra.mxu0 %v111
  %v238 = vpop.f32.mrf.mxu0
  %v239 = vadd.f32 %v51, %v238
  %v240 = vpop.f32.mrf.mxu0
  %v241 = vadd.f32 %v51, %v240
  %242 = vmatmul.bf16.gmra.mxu0 %v113
  %v243 = vpop.f32.mrf.mxu0
  %v244 = vadd.f32 %v51, %v243
  %v245 = vpop.f32.mrf.mxu0
  %v246 = vadd.f32 %v51, %v245
  %247 = vmatmul.bf16.gmra.mxu0 %v115
  %v248 = vpop.f32.mrf.mxu0
  %v249 = vadd.f32 %v51, %v248
  %v250 = vpop.f32.mrf.mxu0
  %v251 = vadd.f32 %v51, %v250
  %252 = vdwg.mxu0
  %253 = vmatpush.bf16.msra.mxu0 0
  %254 = vmatpush.bf16.msra.mxu0 0
  %255 = vmatpush.bf16.msra.mxu0 0
  %256 = vmatpush.bf16.msra.mxu0 0
  %257 = vmatpush.bf16.msra.mxu0 0
  %258 = vmatpush.bf16.msra.mxu0 0
  %259 = vmatpush.bf16.msra.mxu0 0
  %260 = vmatpush.bf16.msra.mxu0 %v169
  %261 = vmatmul.bf16.gmra.mxu0 %v181
  %v262 = vpop.f32.mrf.mxu0
  %v263 = vadd.f32 %v214, %v262
  %v264 = vpop.f32.mrf.mxu0
  %v265 = vadd.f32 %v216, %v264
  %266 = vmatmul.bf16.gmra.mxu0 %v184
  %v267 = vpop.f32.mrf.mxu0
  %v268 = vadd.f32 %v219, %v267
  %v269 = vpop.f32.mrf.mxu0
  %v270 = vadd.f32 %v221, %v269
  %271 = vmatmul.bf16.gmra.mxu0 %v187
  %v272 = vpop.f32.mrf.mxu0
  %v273 = vadd.f32 %v224, %v272
  %v274 = vpop.f32.mrf.mxu0
  %v275 = vadd.f32 %v226, %v274
  %276 = vmatmul.bf16.gmra.mxu0 %v190
  %v277 = vpop.f32.mrf.mxu0
  %v278 = vadd.f32 %v229, %v277
  %v279 = vpop.f32.mrf.mxu0
  %v280 = vadd.f32 %v231, %v279
  %281 = vmatmul.bf16.gmra.mxu0 %v193
  %v282 = vpop.f32.mrf.mxu0
  %v283 = vadd.f32 %v234, %v282
  %v284 = vpop.f32.mrf.mxu0
  %v285 = vadd.f32 %v236, %v284
  %286 = vmatmul.bf16.gmra.mxu0 %v196
  %v287 = vpop.f32.mrf.mxu0
  %v288 = vadd.f32 %v239, %v287
  %v289 = vpop.f32.mrf.mxu0
  %v290 = vadd.f32 %v241, %v289
  %291 = vmatmul.bf16.gmra.mxu0 %v199
  %v292 = vpop.f32.mrf.mxu0
  %v293 = vadd.f32 %v244, %v292
  %v294 = vpop.f32.mrf.mxu0
  %v295 = vadd.f32 %v246, %v294
  %296 = vmatmul.bf16.gmra.mxu0 %v202
  %v297 = vpop.f32.mrf.mxu0
  %v298 = vadd.f32 %v249, %v297
  %v299 = vpop.f32.mrf.mxu0
  %v300 = vadd.f32 %v251, %v299
  %301 = vdwg.mxu0
  %v302 = vmax.f32 %v263, 0.0
  %v303 = vmax.f32 %v265, 0.0
  %v304 = vmax.f32 %v268, 0.0
  %v305 = vmax.f32 %v270, 0.0
  %v306 = vmax.f32 %v273, 0.0
  %v307 = vmax.f32 %v275, 0.0
  %v308 = vmax.f32 %v278, 0.0
  %v309 = vmax.f32 %v280, 0.0
  %v310 = vmax.f32 %v283, 0.0
  %v311 = vmax.f32 %v285, 0.0
  %v312 = vmax.f32 %v288, 0.0
  %v313 = vmax.f32 %v290, 0.0
  %v314 = vmax.f32 %v293, 0.0
  %v315 = vmax.f32 %v295, 0.0
  %v316 = vmax.f32 %v298, 0.0
  %v317 = vmax.f32 %v300, 0.0
  %318 = vst [vmem:[%s3] sm:$0xff] %v302
  %319 = vst [vmem:[%s3 + $0x8] sm:$0xff] %v303
  %320 = vst [vmem:[%s3 + $0x10] sm:$0xff] %v304
  %321 = vst [vmem:[%s3 + $0x18] sm:$0xff] %v305
  %322 = vst [vmem:[%s3 + $0x20] sm:$0xff] %v306
  %323 = vst [vmem:[%s3 + $0x28] sm:$0xff] %v307
  %324 = vst [vmem:[%s3 + $0x30] sm:$0xff] %v308
  %325 = vst [vmem:[%s3 + $0x38] sm:$0xff] %v309
  %326 = vst [vmem:[%s3 + $0x40] sm:$0xff] %v310
  %327 = vst [vmem:[%s3 + $0x48] sm:$0xff] %v311
  %328 = vst [vmem:[%s3 + $0x50] sm:$0xff] %v312
  %329 = vst [vmem:[%s3 + $0x58] sm:$0xff] %v313
  %330 = vst [vmem:[%s3 + $0x60] sm:$0xff] %v314
  %331 = vst [vmem:[%s3 + $0x68] sm:$0xff] %v315
  %332 = vst [vmem:[%s3 + $0x70] sm:$0xff] %v316
  %333 = vst [vmem:[%s3 + $0x78] sm:$0xff] %v317
  // Predicated region
  $region14: #{encoder_forward.8} parent=0 // pred_check
    _
  $region15: #{encoder_forward.8} parent=0 // pred_check_branch
    %335 = sbr.rel (0) target = $region17
  $region16: #{encoder_forward.8} parent=0 // pred_region
    _
  $region17: #{encoder_forward.8} parent=0 // pred_fallthru
    _
  // Predicated region
  $region18: #{encoder_forward.8} parent=0 // pred_check
    _
  $region19: #{encoder_forward.8} parent=0 // pred_check_branch
    %337 = sbr.rel (0) target = $region21
  $region20: #{encoder_forward.8} parent=0 // pred_region
    _
  $region21: #{encoder_forward.8} parent=0 // pred_fallthru
    _

// kernel: encoder_forward.9
$region0: #{encoder_forward.9}
  #allocation0 [shape = 'u32[]', space=smem, size = 0x4, offset = 0x4, fixed_abs, tag = 'smem constant byte address 0x4 - core index']
  #allocation1 [shape = 'u32[72,128]{1,0:T(1,128)}', space=vmem, size = 0x9000, scoped, tag = 'internal scratch']
  %s0 = inlined_call_operand.vmem [shape: bf16[128,288], index: 0, kind: input, shape index: {}]
  %s1 = inlined_call_operand.vmem [shape: bf16[288,128], index: 1, kind: input, shape index: {}]
  %s2 = inlined_call_operand.vmem [shape: f32[1,128], index: 2, kind: input, shape index: {}]
  %s3 = inlined_call_operand.vmem [shape: bf16[128,16], index: 3, kind: input, shape index: {}]
  %s4 = inlined_call_operand.vmem [shape: bf16[16,128], index: 4, kind: input, shape index: {}]
  %s5 = inlined_call_operand.vmem [shape: f32[1,128], index: 5, kind: input, shape index: {}]
  %s6 = inlined_call_operand.hbm [shape: f32[128,128], index: 6, kind: output, shape index: {}]
  %s7 = sld [smem:[#allocation0]]
  $region34: #{encoder_forward.9} parent=0
    _
  %s9 = ssub.s32 1, %s7
  %s10 = scalar_select 0, %s9, %s7
  $region1: #{encoder_forward.9} parent=0
    #allocation2 [shape = 'u8[65536]{0}', space=vmem, size = 0x10000, scoped, tag = 'output window, operand 0, single buffered']
    #allocation3 [shape = 's32[1]{0}', space=sflag, size = 0x4, scoped, tag = 'scoped memory for encoder_forward.9']
    %11 = vsyncpa [#allocation3], 0
    // Predicated region
    $region2: #{encoder_forward.9} parent=1 // pred_check
      _
    $region3: #{encoder_forward.9} parent=1 // pred_check_branch
      %13 = sbr.rel (0) target = $region5
    $region4: #{encoder_forward.9} parent=1 // pred_region
      _
    $region5: #{encoder_forward.9} parent=1 // pred_fallthru
      _
    // Predicated region
    $region6: #{encoder_forward.9} parent=1 // pred_check
      _
    $region7: #{encoder_forward.9} parent=1 // pred_check_branch
      %15 = sbr.rel (0) target = $region9
    $region8: #{encoder_forward.9} parent=1 // pred_region
      _
    $region9: #{encoder_forward.9} parent=1 // pred_fallthru
      _
    // Predicated region
    $region10: #{encoder_forward.9} parent=1 // pred_check
      _
    $region11: #{encoder_forward.9} parent=1 // pred_check_branch
      %17 = sbr.rel (0) target = $region13
    $region12: #{encoder_forward.9} parent=1 // pred_region
      _
    $region13: #{encoder_forward.9} parent=1 // pred_fallthru
      _
    // Predicated region
    $region14: #{encoder_forward.9} parent=1 // pred_check
      _
    $region15: #{encoder_forward.9} parent=1 // pred_check_branch
      %19 = sbr.rel (0) target = $region17
    $region16: #{encoder_forward.9} parent=1 // pred_region
      _
    $region17: #{encoder_forward.9} parent=1 // pred_fallthru
      _
    // Predicated region
    $region18: #{encoder_forward.9} parent=1 // pred_check
      _
    $region19: #{encoder_forward.9} parent=1 // pred_check_branch
      %21 = sbr.rel (0) target = $region21
    $region20: #{encoder_forward.9} parent=1 // pred_region
      _
    $region21: #{encoder_forward.9} parent=1 // pred_fallthru
      _
    // Predicated region
    $region22: #{encoder_forward.9} parent=1 // pred_check
      _
    $region23: #{encoder_forward.9} parent=1 // pred_check_branch
      %23 = sbr.rel (0) target = $region25
    $region24: #{encoder_forward.9} parent=1 // pred_region
      _
    $region25: #{encoder_forward.9} parent=1 // pred_fallthru
      _
    %v25 = vld [vmem:[%s0] sm:$0xff]
    %v26 = vld [vmem:[%s0 + $0x8] sm:$0xf]
    %v27 = vld [vmem:[%s0 + $0xc] sm:$0xff]
    %v28 = vld [vmem:[%s0 + $0x14] sm:$0xf]
    %v29 = vld [vmem:[%s0 + $0x18] sm:$0xff]
    %v30 = vld [vmem:[%s0 + $0x20] sm:$0xf]
    %v31 = vld [vmem:[%s0 + $0x24] sm:$0xff]
    %v32 = vld [vmem:[%s0 + $0x2c] sm:$0xf]
    %v33 = vld [vmem:[%s0 + $0x30] sm:$0xff]
    %v34 = vld [vmem:[%s0 + $0x38] sm:$0xf]
    %v35 = vld [vmem:[%s0 + $0x3c] sm:$0xff]
    %v36 = vld [vmem:[%s0 + $0x44] sm:$0xf]
    %v37 = vld [vmem:[%s0 + $0x48] sm:$0xff]
    %v38 = vld [vmem:[%s0 + $0x50] sm:$0xf]
    %v39 = vld [vmem:[%s0 + $0x54] sm:$0xff]
    %v40 = vld [vmem:[%s0 + $0x5c] sm:$0xf]
    %v41 = vld [vmem:[%s0 + $0x60] sm:$0xff]
    %v42 = vld [vmem:[%s0 + $0x68] sm:$0xf]
    %v43 = vld [vmem:[%s0 + $0x6c] sm:$0xff]
    %v44 = vld [vmem:[%s0 + $0x74] sm:$0xf]
    %v45 = vld [vmem:[%s0 + $0x78] sm:$0xff]
    %v46 = vld [vmem:[%s0 + $0x80] sm:$0xf]
    %v47 = vld [vmem:[%s0 + $0x84] sm:$0xff]
    %v48 = vld [vmem:[%s0 + $0x8c] sm:$0xf]
    %v49 = vld [vmem:[%s0 + $0x90] sm:$0xff]
    %v50 = vld [vmem:[%s0 + $0x98] sm:$0xf]
    %v51 = vld [vmem:[%s0 + $0x9c] sm:$0xff]
    %v52 = vld [vmem:[%s0 + $0xa4] sm:$0xf]
    %v53 = vld [vmem:[%s0 + $0xa8] sm:$0xff]
    %v54 = vld [vmem:[%s0 + $0xb0] sm:$0xf]
    %v55 = vld [vmem:[%s0 + $0xb4] sm:$0xff]
    %v56 = vld [vmem:[%s0 + $0xbc] sm:$0xf]
    %v57 = vld [vmem:[%s1] sm:$0xf]
    %v58 = vld [vmem:[%s1 + $0x4] sm:$0xf]
    %v59 = vld [vmem:[%s1 + $0x8] sm:$0xf]
    %v60 = vld [vmem:[%s1 + $0xc] sm:$0xf]
    %v61 = vld [vmem:[%s1 + $0x10] sm:$0xf]
    %v62 = vld [vmem:[%s1 + $0x14] sm:$0xf]
    %v63 = vld [vmem:[%s1 + $0x18] sm:$0xf]
    %v64 = vld [vmem:[%s1 + $0x1c] sm:$0xf]
    %v65 = vld [vmem:[%s1 + $0x20] sm:$0xf]
    %v66 = vld [vmem:[%s1 + $0x24] sm:$0xf]
    %v67 = vld [vmem:[%s1 + $0x28] sm:$0xf]
    %v68 = vld [vmem:[%s1 + $0x2c] sm:$0xf]
    %v69 = vld [vmem:[%s1 + $0x30] sm:$0xf]
    %v70 = vld [vmem:[%s1 + $0x34] sm:$0xf]
    %v71 = vld [vmem:[%s1 + $0x38] sm:$0xf]
    %v72 = vld [vmem:[%s1 + $0x3c] sm:$0xf]
    %v73 = vld [vmem:[%s1 + $0x40] sm:$0xf]
    %v74 = vld [vmem:[%s1 + $0x44] sm:$0xf]
    %v75 = vld [vmem:[%s1 + $0x48] sm:$0xf]
    %v76 = vld [vmem:[%s1 + $0x4c] sm:$0xf]
    %v77 = vld [vmem:[%s1 + $0x50] sm:$0xf]
    %v78 = vld [vmem:[%s1 + $0x54] sm:$0xf]
    %v79 = vld [vmem:[%s1 + $0x58] sm:$0xf]
    %v80 = vld [vmem:[%s1 + $0x5c] sm:$0xf]
    %v81 = vld [vmem:[%s1 + $0x60] sm:$0xf]
    %v82 = vld [vmem:[%s1 + $0x64] sm:$0xf]
    %v83 = vld [vmem:[%s1 + $0x68] sm:$0xf]
    %v84 = vld [vmem:[%s1 + $0x6c] sm:$0xf]
    %v85 = vld [vmem:[%s1 + $0x70] sm:$0xf]
    %v86 = vld [vmem:[%s1 + $0x74] sm:$0xf]
    %v87 = vld [vmem:[%s1 + $0x78] sm:$0xf]
    %v88 = vld [vmem:[%s1 + $0x7c] sm:$0xf]
    %v89 = vld [vmem:[%s1 + $0x80] sm:$0xf]
    %v90 = vld [vmem:[%s1 + $0x84] sm:$0xf]
    %v91 = vld [vmem:[%s1 + $0x88] sm:$0xf]
    %v92 = vld [vmem:[%s1 + $0x8c] sm:$0xf]
    %v93 = vld [vmem:[%s2] sm:$0x1]
    %v95 = vperm.slane %v93, 0
    %v129 = vunpack.c.l.b16 %v25
    %v130 = vunpack.c.h.b16 %v25
    %v131 = vunpack.c.l.b16 %v26
    %v132 = vunpack.c.l.b16 %v27
    %v133 = vunpack.c.h.b16 %v27
    %v134 = vunpack.c.l.b16 %v28
    %v135 = vunpack.c.l.b16 %v29
    %v136 = vunpack.c.h.b16 %v29
    %v137 = vunpack.c.l.b16 %v30
    %v138 = vunpack.c.l.b16 %v31
    %v139 = vunpack.c.h.b16 %v31
    %v140 = vunpack.c.l.b16 %v32
    %v141 = vunpack.c.l.b16 %v33
    %v142 = vunpack.c.h.b16 %v33
    %v143 = vunpack.c.l.b16 %v34
    %v144 = vunpack.c.l.b16 %v35
    %v145 = vunpack.c.h.b16 %v35
    %v146 = vunpack.c.l.b16 %v36
    %v147 = vunpack.c.l.b16 %v37
    %v148 = vunpack.c.h.b16 %v37
    %v149 = vunpack.c.l.b16 %v38
    %v150 = vunpack.c.l.b16 %v39
    %v151 = vunpack.c.h.b16 %v39
    %v152 = vunpack.c.l.b16 %v40
    %v153 = vunpack.c.l.b16 %v41
    %v154 = vunpack.c.h.b16 %v41
    %v155 = vunpack.c.l.b16 %v42
    %v156 = vunpack.c.l.b16 %v43
    %v157 = vunpack.c.h.b16 %v43
    %v158 = vunpack.c.l.b16 %v44
    %v159 = vunpack.c.l.b16 %v45
    %v160 = vunpack.c.h.b16 %v45
    %v161 = vunpack.c.l.b16 %v46
    %v162 = vunpack.c.l.b16 %v47
    %v163 = vunpack.c.h.b16 %v47
    %v164 = vunpack.c.l.b16 %v48
    %v165 = vunpack.c.l.b16 %v49
    %v166 = vunpack.c.h.b16 %v49
    %v167 = vunpack.c.l.b16 %v50
    %v168 = vunpack.c.l.b16 %v51
    %v169 = vunpack.c.h.b16 %v51
    %v170 = vunpack.c.l.b16 %v52
    %v171 = vunpack.c.l.b16 %v53
    %v172 = vunpack.c.h.b16 %v53
    %v173 = vunpack.c.l.b16 %v54
    %v174 = vunpack.c.l.b16 %v55
    %v175 = vunpack.c.h.b16 %v55
    %v176 = vunpack.c.l.b16 %v56
    %v177 = vpack.c.b16 %v132, %v129
    %v178 = vpack.c.b16 %v133, %v130
    %v179 = vpack.c.b16 %v134, %v131
    %v180 = vpack.c.b16 %v138, %v135
    %v181 = vpack.c.b16 %v139, %v136
    %v182 = vpack.c.b16 %v140, %v137
    %v183 = vpack.c.b16 %v144, %v141
    %v184 = vpack.c.b16 %v145, %v142
    %v185 = vpack.c.b16 %v146, %v143
    %v186 = vpack.c.b16 %v150, %v147
    %v187 = vpack.c.b16 %v151, %v148
    %v188 = vpack.c.b16 %v152, %v149
    %v189 = vpack.c.b16 %v156, %v153
    %v190 = vpack.c.b16 %v157, %v154
    %v191 = vpack.c.b16 %v158, %v155
    %v192 = vpack.c.b16 %v162, %v159
    %v193 = vpack.c.b16 %v163, %v160
    %v194 = vpack.c.b16 %v164, %v161
    %v195 = vpack.c.b16 %v168, %v165
    %v196 = vpack.c.b16 %v169, %v166
    %v197 = vpack.c.b16 %v170, %v167
    %v198 = vpack.c.b16 %v174, %v171
    %v199 = vpack.c.b16 %v175, %v172
    %v200 = vpack.c.b16 %v176, %v173
    %v253 = vunpack.c.l.b16 %v57
    %v254 = vunpack.c.l.b16 %v58
    %v255 = vunpack.c.l.b16 %v59
    %v256 = vunpack.c.l.b16 %v60
    %v257 = vunpack.c.l.b16 %v61
    %v258 = vunpack.c.l.b16 %v62
    %v259 = vunpack.c.l.b16 %v63
    %v260 = vunpack.c.l.b16 %v64
    %v261 = vunpack.c.l.b16 %v65
    %v262 = vunpack.c.l.b16 %v66
    %v263 = vunpack.c.l.b16 %v67
    %v264 = vunpack.c.l.b16 %v68
    %v265 = vunpack.c.l.b16 %v69
    %v266 = vunpack.c.l.b16 %v70
    %v267 = vunpack.c.l.b16 %v71
    %v268 = vunpack.c.l.b16 %v72
    %v269 = vunpack.c.l.b16 %v73
    %v270 = vunpack.c.l.b16 %v74
    %v271 = vunpack.c.l.b16 %v75
    %v272 = vunpack.c.l.b16 %v76
    %v273 = vunpack.c.l.b16 %v77
    %v274 = vunpack.c.l.b16 %v78
    %v275 = vunpack.c.l.b16 %v79
    %v276 = vunpack.c.l.b16 %v80
    %v277 = vunpack.c.l.b16 %v81
    %v278 = vunpack.c.l.b16 %v82
    %v279 = vunpack.c.l.b16 %v83
    %v280 = vunpack.c.l.b16 %v84
    %v281 = vunpack.c.l.b16 %v85
    %v282 = vunpack.c.l.b16 %v86
    %v283 = vunpack.c.l.b16 %v87
    %v284 = vunpack.c.l.b16 %v88
    %v285 = vunpack.c.l.b16 %v89
    %v286 = vunpack.c.l.b16 %v90
    %v287 = vunpack.c.l.b16 %v91
    %v288 = vunpack.c.l.b16 %v92
    %v289 = vpack.c.b16 %v254, %v253
    %v290 = vpack.c.b16 %v256, %v255
    %v291 = vpack.c.b16 %v258, %v257
    %v292 = vpack.c.b16 %v260, %v259
    %v293 = vpack.c.b16 %v262, %v261
    %v294 = vpack.c.b16 %v264, %v263
    %v295 = vpack.c.b16 %v266, %v265
    %v296 = vpack.c.b16 %v268, %v267
    %v297 = vpack.c.b16 %v270, %v269
    %v298 = vpack.c.b16 %v272, %v271
    %v299 = vpack.c.b16 %v274, %v273
    %v300 = vpack.c.b16 %v276, %v275
    %v301 = vpack.c.b16 %v278, %v277
    %v302 = vpack.c.b16 %v280, %v279
    %v303 = vpack.c.b16 %v282, %v281
    %v304 = vpack.c.b16 %v284, %v283
    %v305 = vpack.c.b16 %v286, %v285
    %v306 = vpack.c.b16 %v288, %v287
    %vm325 = vcmask 261120
    %v327 = vsel %vm325, %v179, 0
    %v330 = vsel %vm325, %v182, 0
    %v333 = vsel %vm325, %v185, 0
    %v336 = vsel %vm325, %v188, 0
    %v339 = vsel %vm325, %v191, 0
    %v342 = vsel %vm325, %v194, 0
    %v345 = vsel %vm325, %v197, 0
    %v348 = vsel %vm325, %v200, 0
    %350 = vmatpush.bf16.msra.mxu0 %v296
    %351 = vmatpush.bf16.msra.mxu0 %v295
    %352 = vmatpush.bf16.msra.mxu0 %v294
    %353 = vmatpush.bf16.msra.mxu0 %v293
    %354 = vmatpush.bf16.msra.mxu0 %v292
    %355 = vmatpush.bf16.msra.mxu0 %v291
    %356 = vmatpush.bf16.msra.mxu0 %v290
    %357 = vmatpush.bf16.msra.mxu0 %v289
    %358 = vmatmul.bf16.gmra.mxu0 %v177
    %v359 = vpop.f32.mrf.mxu0
    %v360 = vadd.f32 %v95, %v359
    %v361 = vpop.f32.mrf.mxu0
    %v362 = vadd.f32 %v95, %v361
    %363 = vmatmul.bf16.gmra.mxu0 %v180
    %v364 = vpop.f32.mrf.mxu0
    %v365 = vadd.f32 %v95, %v364
    %v366 = vpop.f32.mrf.mxu0
    %v367 = vadd.f32 %v95, %v366
    %368 = vmatmul.bf16.gmra.mxu0 %v183
    %v369 = vpop.f32.mrf.mxu0
    %v370 = vadd.f32 %v95, %v369
    %v371 = vpop.f32.mrf.mxu0
    %v372 = vadd.f32 %v95, %v371
    %373 = vmatmul.bf16.gmra.mxu0 %v186
    %v374 = vpop.f32.mrf.mxu0
    %v375 = vadd.f32 %v95, %v374
    %v376 = vpop.f32.mrf.mxu0
    %v377 = vadd.f32 %v95, %v376
    %378 = vmatmul.bf16.gmra.mxu0 %v189
    %v379 = vpop.f32.mrf.mxu0
    %v380 = vadd.f32 %v95, %v379
    %v381 = vpop.f32.mrf.mxu0
    %v382 = vadd.f32 %v95, %v381
    %383 = vmatmul.bf16.gmra.mxu0 %v192
    %v384 = vpop.f32.mrf.mxu0
    %v385 = vadd.f32 %v95, %v384
    %v386 = vpop.f32.mrf.mxu0
    %v387 = vadd.f32 %v95, %v386
    %388 = vmatmul.bf16.gmra.mxu0 %v195
    %v389 = vpop.f32.mrf.mxu0
    %v390 = vadd.f32 %v95, %v389
    %v391 = vpop.f32.mrf.mxu0
    %v392 = vadd.f32 %v95, %v391
    %393 = vmatmul.bf16.gmra.mxu0 %v198
    %v394 = vpop.f32.mrf.mxu0
    %v395 = vadd.f32 %v95, %v394
    %v396 = vpop.f32.mrf.mxu0
    %v397 = vadd.f32 %v95, %v396
    %398 = vdwg.mxu0
    %399 = vmatpush.bf16.msra.mxu0 %v304
    %400 = vmatpush.bf16.msra.mxu0 %v303
    %401 = vmatpush.bf16.msra.mxu0 %v302
    %402 = vmatpush.bf16.msra.mxu0 %v301
    %403 = vmatpush.bf16.msra.mxu0 %v300
    %404 = vmatpush.bf16.msra.mxu0 %v299
    %405 = vmatpush.bf16.msra.mxu0 %v298
    %406 = vmatpush.bf16.msra.mxu0 %v297
    %407 = vmatmul.bf16.gmra.mxu0 %v178
    %v408 = vpop.f32.mrf.mxu0
    %v409 = vadd.f32 %v360, %v408
    %v410 = vpop.f32.mrf.mxu0
    %v411 = vadd.f32 %v362, %v410
    %412 = vmatmul.bf16.gmra.mxu0 %v181
    %v413 = vpop.f32.mrf.mxu0
    %v414 = vadd.f32 %v365, %v413
    %v415 = vpop.f32.mrf.mxu0
    %v416 = vadd.f32 %v367, %v415
    %417 = vmatmul.bf16.gmra.mxu0 %v184
    %v418 = vpop.f32.mrf.mxu0
    %v419 = vadd.f32 %v370, %v418
    %v420 = vpop.f32.mrf.mxu0
    %v421 = vadd.f32 %v372, %v420
    %422 = vmatmul.bf16.gmra.mxu0 %v187
    %v423 = vpop.f32.mrf.mxu0
    %v424 = vadd.f32 %v375, %v423
    %v425 = vpop.f32.mrf.mxu0
    %v426 = vadd.f32 %v377, %v425
    %427 = vmatmul.bf16.gmra.mxu0 %v190
    %v428 = vpop.f32.mrf.mxu0
    %v429 = vadd.f32 %v380, %v428
    %v430 = vpop.f32.mrf.mxu0
    %v431 = vadd.f32 %v382, %v430
    %432 = vmatmul.bf16.gmra.mxu0 %v193
    %v433 = vpop.f32.mrf.mxu0
    %v434 = vadd.f32 %v385, %v433
    %v435 = vpop.f32.mrf.mxu0
    %v436 = vadd.f32 %v387, %v435
    %437 = vmatmul.bf16.gmra.mxu0 %v196
    %v438 = vpop.f32.mrf.mxu0
    %v439 = vadd.f32 %v390, %v438
    %v440 = vpop.f32.mrf.mxu0
    %v441 = vadd.f32 %v392, %v440
    %442 = vmatmul.bf16.gmra.mxu0 %v199
    %v443 = vpop.f32.mrf.mxu0
    %v444 = vadd.f32 %v395, %v443
    %v445 = vpop.f32.mrf.mxu0
    %v446 = vadd.f32 %v397, %v445
    %447 = vdwg.mxu0
    %448 = vmatpush.bf16.msra.mxu0 0
    %449 = vmatpush.bf16.msra.mxu0 0
    %450 = vmatpush.bf16.msra.mxu0 0
    %451 = vmatpush.bf16.msra.mxu0 0
    %452 = vmatpush.bf16.msra.mxu0 0
    %453 = vmatpush.bf16.msra.mxu0 0
    %454 = vmatpush.bf16.msra.mxu0 %v306
    %455 = vmatpush.bf16.msra.mxu0 %v305
    %456 = vmatmul.bf16.gmra.mxu0 %v327
    %v457 = vpop.f32.mrf.mxu0
    %v458 = vadd.f32 %v409, %v457
    %v459 = vpop.f32.mrf.mxu0
    %v460 = vadd.f32 %v411, %v459
    %461 = vmatmul.bf16.gmra.mxu0 %v330
    %v462 = vpop.f32.mrf.mxu0
    %v463 = vadd.f32 %v414, %v462
    %v464 = vpop.f32.mrf.mxu0
    %v465 = vadd.f32 %v416, %v464
    %466 = vmatmul.bf16.gmra.mxu0 %v333
    %v467 = vpop.f32.mrf.mxu0
    %v468 = vadd.f32 %v419, %v467
    %v469 = vpop.f32.mrf.mxu0
    %v470 = vadd.f32 %v421, %v469
    %471 = vmatmul.bf16.gmra.mxu0 %v336
    %v472 = vpop.f32.mrf.mxu0
    %v473 = vadd.f32 %v424, %v472
    %v474 = vpop.f32.mrf.mxu0
    %v475 = vadd.f32 %v426, %v474
    %476 = vmatmul.bf16.gmra.mxu0 %v339
    %v477 = vpop.f32.mrf.mxu0
    %v478 = vadd.f32 %v429, %v477
    %v479 = vpop.f32.mrf.mxu0
    %v480 = vadd.f32 %v431, %v479
    %481 = vmatmul.bf16.gmra.mxu0 %v342
    %v482 = vpop.f32.mrf.mxu0
    %v483 = vadd.f32 %v434, %v482
    %v484 = vpop.f32.mrf.mxu0
    %v485 = vadd.f32 %v436, %v484
    %486 = vmatmul.bf16.gmra.mxu0 %v345
    %v487 = vpop.f32.mrf.mxu0
    %v488 = vadd.f32 %v439, %v487
    %v489 = vpop.f32.mrf.mxu0
    %v490 = vadd.f32 %v441, %v489
    %491 = vmatmul.bf16.gmra.mxu0 %v348
    %v492 = vpop.f32.mrf.mxu0
    %v493 = vadd.f32 %v444, %v492
    %v494 = vpop.f32.mrf.mxu0
    %v495 = vadd.f32 %v446, %v494
    %496 = vdwg.mxu0
    %v497 = vld [vmem:[%s3] sm:$0xf]
    %v498 = vld [vmem:[%s3 + $0x4] sm:$0xf]
    %v499 = vld [vmem:[%s3 + $0x8] sm:$0xf]
    %v500 = vld [vmem:[%s3 + $0xc] sm:$0xf]
    %v501 = vld [vmem:[%s3 + $0x10] sm:$0xf]
    %v502 = vld [vmem:[%s3 + $0x14] sm:$0xf]
    %v503 = vld [vmem:[%s3 + $0x18] sm:$0xf]
    %v504 = vld [vmem:[%s3 + $0x1c] sm:$0xf]
    %v505 = vld [vmem:[%s3 + $0x20] sm:$0xf]
    %v506 = vld [vmem:[%s3 + $0x24] sm:$0xf]
    %v507 = vld [vmem:[%s3 + $0x28] sm:$0xf]
    %v508 = vld [vmem:[%s3 + $0x2c] sm:$0xf]
    %v509 = vld [vmem:[%s3 + $0x30] sm:$0xf]
    %v510 = vld [vmem:[%s3 + $0x34] sm:$0xf]
    %v511 = vld [vmem:[%s3 + $0x38] sm:$0xf]
    %v512 = vld [vmem:[%s3 + $0x3c] sm:$0xf]
    %v513 = vld [vmem:[%s4] sm:$0xf]
    %v514 = vld [vmem:[%s4 + $0x4] sm:$0xf]
    %v531 = vunpack.c.l.b16 %v497
    %v532 = vunpack.c.l.b16 %v498
    %v533 = vunpack.c.l.b16 %v499
    %v534 = vunpack.c.l.b16 %v500
    %v535 = vunpack.c.l.b16 %v501
    %v536 = vunpack.c.l.b16 %v502
    %v537 = vunpack.c.l.b16 %v503
    %v538 = vunpack.c.l.b16 %v504
    %v539 = vunpack.c.l.b16 %v505
    %v540 = vunpack.c.l.b16 %v506
    %v541 = vunpack.c.l.b16 %v507
    %v542 = vunpack.c.l.b16 %v508
    %v543 = vunpack.c.l.b16 %v509
    %v544 = vunpack.c.l.b16 %v510
    %v545 = vunpack.c.l.b16 %v511
    %v546 = vunpack.c.l.b16 %v512
    %v547 = vpack.c.b16 %v532, %v531
    %v548 = vpack.c.b16 %v534, %v533
    %v549 = vpack.c.b16 %v536, %v535
    %v550 = vpack.c.b16 %v538, %v537
    %v551 = vpack.c.b16 %v540, %v539
    %v552 = vpack.c.b16 %v542, %v541
    %v553 = vpack.c.b16 %v544, %v543
    %v554 = vpack.c.b16 %v546, %v545
    %v557 = vunpack.c.l.b16 %v513
    %v558 = vunpack.c.l.b16 %v514
    %v559 = vpack.c.b16 %v558, %v557
    %vm561 = vcmask 130048
    %v563 = vsel %vm561, %v547, 0
    %v566 = vsel %vm561, %v548, 0
    %v569 = vsel %vm561, %v549, 0
    %v572 = vsel %vm561, %v550, 0
    %v575 = vsel %vm561, %v551, 0
    %v578 = vsel %vm561, %v552, 0
    %v581 = vsel %vm561, %v553, 0
    %v584 = vsel %vm561, %v554, 0
    %586 = vmatpush.bf16.msra.mxu0 0
    %587 = vmatpush.bf16.msra.mxu0 0
    %588 = vmatpush.bf16.msra.mxu0 0
    %589 = vmatpush.bf16.msra.mxu0 0
    %590 = vmatpush.bf16.msra.mxu0 0
    %591 = vmatpush.bf16.msra.mxu0 0
    %592 = vmatpush.bf16.msra.mxu0 0
    %593 = vmatpush.bf16.msra.mxu0 %v559
    %594 = vmatmul.bf16.gmra.mxu0 %v563
    %v595 = vpop.f32.mrf.mxu0
    %v596 = vadd.f32 0.0, %v595
    %v597 = vpop.f32.mrf.mxu0
    %v598 = vadd.f32 0.0, %v597
    %599 = vmatmul.bf16.gmra.mxu0 %v566
    %v600 = vpop.f32.mrf.mxu0
    %v601 = vadd.f32 0.0, %v600
    %v602 = vpop.f32.mrf.mxu0
    %v603 = vadd.f32 0.0, %v602
    %604 = vmatmul.bf16.gmra.mxu0 %v569
    %v605 = vpop.f32.mrf.mxu0
    %v606 = vadd.f32 0.0, %v605
    %v607 = vpop.f32.mrf.mxu0
    %v608 = vadd.f32 0.0, %v607
    %609 = vmatmul.bf16.gmra.mxu0 %v572
    %v610 = vpop.f32.mrf.mxu0
    %v611 = vadd.f32 0.0, %v610
    %v612 = vpop.f32.mrf.mxu0
    %v613 = vadd.f32 0.0, %v612
    %614 = vmatmul.bf16.gmra.mxu0 %v575
    %v615 = vpop.f32.mrf.mxu0
    %v616 = vadd.f32 0.0, %v615
    %v617 = vpop.f32.mrf.mxu0
    %v618 = vadd.f32 0.0, %v617
    %619 = vmatmul.bf16.gmra.mxu0 %v578
    %v620 = vpop.f32.mrf.mxu0
    %v621 = vadd.f32 0.0, %v620
    %v622 = vpop.f32.mrf.mxu0
    %v623 = vadd.f32 0.0, %v622
    %624 = vmatmul.bf16.gmra.mxu0 %v581
    %v625 = vpop.f32.mrf.mxu0
    %v626 = vadd.f32 0.0, %v625
    %v627 = vpop.f32.mrf.mxu0
    %v628 = vadd.f32 0.0, %v627
    %629 = vmatmul.bf16.gmra.mxu0 %v584
    %v630 = vpop.f32.mrf.mxu0
    %v631 = vadd.f32 0.0, %v630
    %v632 = vpop.f32.mrf.mxu0
    %v633 = vadd.f32 0.0, %v632
    %634 = vdwg.mxu0
    %v635 = vadd.f32 %v458, %v596
    %v636 = vadd.f32 %v460, %v598
    %v637 = vadd.f32 %v463, %v601
    %v638 = vadd.f32 %v465, %v603
    %v639 = vadd.f32 %v468, %v606
    %v640 = vadd.f32 %v470, %v608
    %v641 = vadd.f32 %v473, %v611
    %v642 = vadd.f32 %v475, %v613
    %v643 = vadd.f32 %v478, %v616
    %v644 = vadd.f32 %v480, %v618
    %v645 = vadd.f32 %v483, %v621
    %v646 = vadd.f32 %v485, %v623
    %v647 = vadd.f32 %v488, %v626
    %v648 = vadd.f32 %v490, %v628
    %v649 = vadd.f32 %v493, %v631
    %v650 = vadd.f32 %v495, %v633
    %v651 = vld [vmem:[%s5] sm:$0x1]
    %v653 = vperm.slane %v651, 0
    %v655 = vadd.f32 %v635, %v653
    %v656 = vadd.f32 %v636, %v653
    %v657 = vadd.f32 %v637, %v653
    %v658 = vadd.f32 %v638, %v653
    %v659 = vadd.f32 %v639, %v653
    %v660 = vadd.f32 %v640, %v653
    %v661 = vadd.f32 %v641, %v653
    %v662 = vadd.f32 %v642, %v653
    %v663 = vadd.f32 %v643, %v653
    %v664 = vadd.f32 %v644, %v653
    %v665 = vadd.f32 %v645, %v653
    %v666 = vadd.f32 %v646, %v653
    %v667 = vadd.f32 %v647, %v653
    %v668 = vadd.f32 %v648, %v653
    %v669 = vadd.f32 %v649, %v653
    %v670 = vadd.f32 %v650, %v653
    %v671 = vmax.f32 %v655, 0.0
    %v672 = vmax.f32 %v656, 0.0
    %v673 = vmax.f32 %v657, 0.0
    %v674 = vmax.f32 %v658, 0.0
    %v675 = vmax.f32 %v659, 0.0
    %v676 = vmax.f32 %v660, 0.0
    %v677 = vmax.f32 %v661, 0.0
    %v678 = vmax.f32 %v662, 0.0
    %v679 = vmax.f32 %v663, 0.0
    %v680 = vmax.f32 %v664, 0.0
    %v681 = vmax.f32 %v665, 0.0
    %v682 = vmax.f32 %v666, 0.0
    %v683 = vmax.f32 %v667, 0.0
    %v684 = vmax.f32 %v668, 0.0
    %v685 = vmax.f32 %v669, 0.0
    %v686 = vmax.f32 %v670, 0.0
    %687 = vst [vmem:[#allocation2] sm:$0xff] %v671
    %688 = vst [vmem:[#allocation2 + $0x8] sm:$0xff] %v672
    %689 = vst [vmem:[#allocation2 + $0x10] sm:$0xff] %v673
    %690 = vst [vmem:[#allocation2 + $0x18] sm:$0xff] %v674
    %691 = vst [vmem:[#allocation2 + $0x20] sm:$0xff] %v675
    %692 = vst [vmem:[#allocation2 + $0x28] sm:$0xff] %v676
    %693 = vst [vmem:[#allocation2 + $0x30] sm:$0xff] %v677
    %694 = vst [vmem:[#allocation2 + $0x38] sm:$0xff] %v678
    %695 = vst [vmem:[#allocation2 + $0x40] sm:$0xff] %v679
    %696 = vst [vmem:[#allocation2 + $0x48] sm:$0xff] %v680
    %697 = vst [vmem:[#allocation2 + $0x50] sm:$0xff] %v681
    %698 = vst [vmem:[#allocation2 + $0x58] sm:$0xff] %v682
    %699 = vst [vmem:[#allocation2 + $0x60] sm:$0xff] %v683
    %700 = vst [vmem:[#allocation2 + $0x68] sm:$0xff] %v684
    %701 = vst [vmem:[#allocation2 + $0x70] sm:$0xff] %v685
    %702 = vst [vmem:[#allocation2 + $0x78] sm:$0xff] %v686
    // Predicated region
    $region26: #{encoder_forward.9} parent=1 // pred_check
      _
    $region27: #{encoder_forward.9} parent=1 // pred_check_branch
      %704 = sbr.rel (0) target = $region29
    $region28: #{encoder_forward.9} parent=1 // pred_region
      %706 = vsyncadd [#allocation3], 0
      %s707 = sshll.u32 [#allocation2], 4
      %s708 = int_to_ptr.vmem [resolvable:$true] %s707
      %s709 = sshll.u32 %s6, 4
      %s710 = int_to_ptr.hbm [resolvable:$true] %s709
      %715 = dma.vmem_to_hbm [thread:$0]  %s708, 2048, %s710, [#allocation3], 128, 128, 8
    $region29: #{encoder_forward.9} parent=1 // pred_fallthru
      _
    // Predicated region
    $region30: #{encoder_forward.9} parent=1 // pred_check
      _
    $region31: #{encoder_forward.9} parent=1 // pred_check_branch
      %717 = sbr.rel (0) target = $region33
    $region32: #{encoder_forward.9} parent=1 // pred_region
      %719 = dma.done [#allocation3], 2048
    $region33: #{encoder_forward.9} parent=1 // pred_fallthru
      _
    %720 = vsyncpa [#allocation3], 1

</llo_original>
